<compile_context>
chip_gen: v5e
topology: v5e:2x2
jax: 0.10.0
libtpu: 0.0.40
codegen_flags: <defaults>
</compile_context>

<pallas_src>
import numpy as np

import jax
import jax.numpy as jnp
from jax import lax
from jax.experimental import pallas as pl
from jax.experimental.pallas import tpu as pltpu


def _cdiv(a, b):
    return -(-a // b)


def _round_up(a, b):
    return _cdiv(a, b) * b


def _num_tensorcores():
    try:
        return max(1, int(getattr(jax.devices()[0], "num_cores", 1)))
    except Exception:
        return 1


def _make_kernel(offsets, cards, n_hot, compute_dtype, mxu_precision):
    """Fused feature-major MLPSQR kernel (batch lives on the lane axis)."""
    n_cat = len(offsets)

    def kernel(xnT_ref, xcT_ref, w1t_ref, b1_ref, w2t_ref, b2_ref,
               w3_ref, b3_ref, out_ref):
        bt = xnT_ref.shape[1]

        # ---- multi-hot over the disjoint per-table row ranges: (n_hot, bt).
        # Built as a bool or-chain (no zeros init / add chain), cast once below.
        row_iota = lax.broadcasted_iota(jnp.int32, (n_hot, bt), 0)
        hot = None
        for i in range(n_cat):
            idx = jnp.clip(xcT_ref[i:i + 1, :], 0, cards[i] - 1) + offsets[i]
            m = row_iota == idx                              # (n_hot, bt) bool
            hot = m if hot is None else jnp.logical_or(hot, m)

        # ---- fc1: single fused matmul over [x_num ; one-hot] against the
        # pre-stacked [W1_num ; folded-embeddings] operand.
        # x_num streams as f32 and is cast here (near-free VPU op).
        act = jnp.concatenate(
            [xnT_ref[...], hot.astype(jnp.float32)], axis=0).astype(compute_dtype)
        h1 = jnp.dot(w1t_ref[...], act, precision=mxu_precision,
                     preferred_element_type=jnp.float32)     # (H1, bt) f32
        # Tanh kept in f32 (required on v5e; on v6e/v7x a bf16 tanh ~2x EUP rate).
        h1 = jnp.tanh(h1 + b1_ref[...]).astype(compute_dtype)

        # ---- fc2 + ReLU
        h2 = jnp.dot(w2t_ref[...], h1, precision=mxu_precision,
                     preferred_element_type=jnp.float32)     # (H2, bt) f32
        h2 = jnp.maximum(h2 + b2_ref[...], 0.0)

        # ---- fc3 (out_features == 1): VPU multiply + cross-sublane reduce;
        # keeps the MXU free and yields the (1, bt) lane-dense row directly.
        z = jnp.sum(h2 * w3_ref[...], axis=0, keepdims=True) + b3_ref[...]

        # ---- numerically stable softplus, lane-dense store.
        out_ref[...] = jnp.maximum(z, 0.0) + jnp.log1p(jnp.exp(-jnp.abs(z)))

    return kernel


def mlp_sqr_forward(x_num, x_cat, params, *, batch_tile=1024,
                    compute_dtype=jnp.bfloat16, num_tensorcores=None,
                    vmem_limit_bytes=None):
    """Forward pass of MLPSQR.

    x_num : (B, F_num) float32
    x_cat : (B, n_cat) int
    params: dict with 'emb' (list of tables), 'w1','b1','w2','b2','w3','b3'
    Returns (out, out) with out shape (B, 1), matching the PyTorch module.
    """
    B, f_num = x_num.shape
    n_cat = x_cat.shape[1]
    w1 = params["w1"]                                        # (D_in, H1)
    H1 = w1.shape[1]
    w2 = params["w2"]                                        # (H1, H2)
    H2 = w2.shape[1]
    d_emb = params["emb"][0].shape[1]

    is_f32 = np.dtype(compute_dtype) == np.dtype(np.float32)
    # Hot-path matmuls run at DEFAULT precision (bf16 operands, f32 accumulate);
    # only the f32 validation path requests HIGHEST.
    mxu_precision = lax.Precision.HIGHEST if is_f32 else lax.Precision.DEFAULT

    # ---- fold each embedding table through its W1 slice once (tiny, one-off,
    # HIGHEST so the f32 path stays faithful) and stack it under W1_num ->
    # a single fc1 operand of shape (K, H1), K = F_num + n_hot.
    parts = [w1[:f_num]]
    offsets, cards = [], []
    row, col = 0, f_num
    for tbl in params["emb"]:
        parts.append(jnp.dot(tbl, w1[col:col + d_emb],
                             precision=lax.Precision.HIGHEST))
        offsets.append(row)
        cards.append(tbl.shape[0])
        row += tbl.shape[0]
        col += d_emb
    n_hot = row

    # Feature-major (transposed) weights; the bf16 cast is gated on compute_dtype
    # so the f32 validation path carries no extra rounding.
    w1t = jnp.concatenate(parts, axis=0).T.astype(compute_dtype)   # (H1, K) f32-acc'd
    w2t = w2.T.astype(compute_dtype)                               # (H2, H1)
    b1c = params["b1"].reshape(H1, 1)
    b2c = params["b2"].reshape(H2, 1)
    w3c = params["w3"].reshape(H2, 1)
    b3c = params["b3"].reshape(1, 1)

    # ---- batch tiling (batch is the lane axis -> tiles are multiples of 128).
    if num_tensorcores is None:
        num_tensorcores = _num_tensorcores()
    bt_cap = max(128, _round_up(batch_tile, 128))
    if num_tensorcores > 1:
        # >=2 tiles and an even count so the "parallel" axis splits evenly
        # across both TensorCores (v7x).
        bt = min(bt_cap, _round_up(_cdiv(B, 2), 128))
        num_tiles = _cdiv(B, bt)
        num_tiles += num_tiles % 2
    else:
        # Single TensorCore (v5e/v6e): one big tile avoids per-step overhead.
        bt = min(bt_cap, _round_up(B, 128))
        num_tiles = _cdiv(B, bt)
    b_pad = num_tiles * bt

    # Lane-dense inputs: transpose (+ pad the tail lanes).  x_num stays f32
    # (in-kernel cast); x_cat is int32; pad index 0 is always a valid row.
    # TODO(synk): a producer that already supplies (F, B)-layout inputs skips this pass.
    xnT = jnp.pad(x_num.T, ((0, 0), (0, b_pad - B)))
    xcT = jnp.pad(x_cat.astype(jnp.int32).T, ((0, 0), (0, b_pad - B)))

    kernel = _make_kernel(tuple(offsets), tuple(cards), n_hot,
                          compute_dtype, mxu_precision)

    out = pl.pallas_call(
        kernel,
        out_shape=jax.ShapeDtypeStruct((1, b_pad), jnp.float32),
        grid_spec=pltpu.PrefetchScalarGridSpec(
            num_scalar_prefetch=0,
            grid=(num_tiles,),
            in_specs=[
                pl.BlockSpec((f_num, bt), lambda i: (0, i)),       # x_num^T tile
                pl.BlockSpec((n_cat, bt), lambda i: (0, i)),       # x_cat^T tile
                # Weights/biases: constant block index -> DMA'd once and kept
                # VMEM-resident across grid steps.  For real configs on v7x
                # (64 MiB VMEM, large folded table) add
                # pipeline_mode=pl.Buffered(1) on these to drop the 2nd buffer.
                pl.BlockSpec((H1, f_num + n_hot), lambda i: (0, 0)),  # [W1_num;folded]^T
                pl.BlockSpec((H1, 1), lambda i: (0, 0)),           # b1
                pl.BlockSpec((H2, H1), lambda i: (0, 0)),          # W2^T
                pl.BlockSpec((H2, 1), lambda i: (0, 0)),           # b2
                pl.BlockSpec((H2, 1), lambda i: (0, 0)),           # w3 (column)
                pl.BlockSpec((1, 1), lambda i: (0, 0)),            # b3
            ],
            out_specs=pl.BlockSpec((1, bt), lambda i: (0, i)),     # lane-dense out
        ),
        compiler_params=pltpu.CompilerParams(
            dimension_semantics=("parallel",),
            vmem_limit_bytes=vmem_limit_bytes),
    )(xnT, xcT, w1t, b1c, w2t, b2c, w3c, b3c)

    out = out.reshape(-1)[:B].reshape(B, 1)
    return out, out


def init_params(key, *, f_num, max_embedding, dim_embedding,
                hidden_size1, hidden_size2):
    """Deterministic parameter init mirroring the module's __init__ shapes."""
    n_cat = len(max_embedding)
    input_size = f_num + n_cat * dim_embedding

    keys = jax.random.split(key, 6 + n_cat)
    scale = 0.1
    params = {
        # Stored [in, out] so the math is x @ W (PyTorch Linear stores [out, in]).
        "w1": scale * jax.random.normal(keys[0], (input_size, hidden_size1), jnp.float32),
        "b1": scale * jax.random.normal(keys[1], (1, hidden_size1), jnp.float32),
        "w2": scale * jax.random.normal(keys[2], (hidden_size1, hidden_size2), jnp.float32),
        "b2": scale * jax.random.normal(keys[3], (1, hidden_size2), jnp.float32),
        "w3": scale * jax.random.normal(keys[4], (hidden_size2, 1), jnp.float32),
        "b3": scale * jax.random.normal(keys[5], (1, 1), jnp.float32),
        # nn.Embedding(i + 1, dim_embedding) for i in max_embedding
        "emb": [scale * jax.random.normal(keys[6 + i], (m + 1, dim_embedding), jnp.float32)
                for i, m in enumerate(max_embedding)],
    }
    return params, input_size


def _reference_forward(x_num, x_cat, params):
    """Pure-JAX f32 reference (matches the PyTorch module's math)."""
    cat_feats = [jnp.take(tbl, x_cat[:, i], axis=0)
                 for i, tbl in enumerate(params["emb"])]
    x = jnp.concatenate([x_num] + cat_feats, axis=-1)
    h1 = jnp.tanh(x @ params["w1"] + params["b1"])
    h2 = jax.nn.relu(h1 @ params["w2"] + params["b2"])
    z = h2 @ params["w3"] + params["b3"]
    return jax.nn.softplus(z)


if __name__ == "__main__":
    key = jax.random.PRNGKey(0)

    # Small synthetic config (B not a tile multiple -> exercises the padded tail).
    B = 1000
    F_NUM = 8
    MAX_EMBEDDING = [5, 7, 3]      # cardinality-1 per categorical feature
    DIM_EMB = 4
    H1, H2 = 32, 16                # config.input_size == 8 + 3*4 == 20

    pkey, xkey, ckey = jax.random.split(key, 3)
    params, input_size = init_params(
        pkey, f_num=F_NUM, max_embedding=MAX_EMBEDDING,
        dim_embedding=DIM_EMB, hidden_size1=H1, hidden_size2=H2)

    x_num = jax.random.normal(xkey, (B, F_NUM), jnp.float32)
    x_cat = jnp.stack(
        [jax.random.randint(jax.random.fold_in(ckey, i), (B,), 0, m + 1)
         for i, m in enumerate(MAX_EMBEDDING)], axis=1).astype(jnp.int32)

    ref = _reference_forward(x_num, x_cat, params)

    # f32 validation path: HIGHEST-precision matmuls, multi-tile grid (bt=256 ->
    # 4 grid steps) exercising tiling, weight residency and the padded tail.
    o32, _ = mlp_sqr_forward(x_num, x_cat, params, batch_tile=256,
                             compute_dtype=jnp.float32, num_tensorcores=1)
    o32 = jax.block_until_ready(o32)
    assert o32.shape == (B, 1)
    assert jnp.allclose(o32, ref, atol=1e-2, rtol=1e-2), "f32 path mismatch"

    # bf16 fast path (default): bf16 MXU operands, f32 accumulation, single big
    # lane-tile on 1-TC parts.  Looser tolerance = expected quantization error.
    o16, o16b = mlp_sqr_forward(x_num, x_cat, params)
    o16 = jax.block_until_ready(o16)
    assert o16.shape == (B, 1)
    assert jnp.allclose(o16, ref, atol=4e-2, rtol=4e-2), "bf16 path mismatch"
    assert jnp.allclose(o16, o16b), "both returned tensors must be identical"

    print("KERNEL_OK")
</pallas_src>

<mosaic_0001>
module attributes {stable_mosaic.version = 11 : i64} {
  func.func @kernel(%arg0: i32, %arg1: memref<8x256xf32, #tpu.memory_space<vmem>>, %arg2: memref<3x256xi32, #tpu.memory_space<vmem>>, %arg3: memref<32x26xf32, #tpu.memory_space<vmem>>, %arg4: memref<32x1xf32, #tpu.memory_space<vmem>>, %arg5: memref<16x32xf32, #tpu.memory_space<vmem>>, %arg6: memref<16x1xf32, #tpu.memory_space<vmem>>, %arg7: memref<16x1xf32, #tpu.memory_space<vmem>>, %arg8: memref<1x1xf32, #tpu.memory_space<vmem>>, %arg9: memref<1x256xf32, #tpu.memory_space<vmem>>) attributes {dimension_semantics = [#tpu.dimension_semantics<parallel>], iteration_bounds = array<i64: 4>, scalar_prefetch = 0 : i64, scratch_operands = 0 : i64, tpu.core_type = #tpu.core_type<tc>, window_params = [{transform_indices = @transform_0, window_bounds = array<i64: 8, 256>}, {transform_indices = @transform_1, window_bounds = array<i64: 3, 256>}, {pipeline_mode = #tpu.pipeline_mode<synchronous>, transform_indices = @transform_2, window_bounds = array<i64: 32, 26>}, {pipeline_mode = #tpu.pipeline_mode<synchronous>, transform_indices = @transform_3, window_bounds = array<i64: 32, 1>}, {pipeline_mode = #tpu.pipeline_mode<synchronous>, transform_indices = @transform_4, window_bounds = array<i64: 16, 32>}, {pipeline_mode = #tpu.pipeline_mode<synchronous>, transform_indices = @transform_5, window_bounds = array<i64: 16, 1>}, {pipeline_mode = #tpu.pipeline_mode<synchronous>, transform_indices = @transform_6, window_bounds = array<i64: 16, 1>}, {pipeline_mode = #tpu.pipeline_mode<synchronous>, transform_indices = @transform_7, window_bounds = array<i64: 1, 1>}, {transform_indices = @transform_8, window_bounds = array<i64: 1, 256>}]} {
    %0 = tpu.iota {dimensions = array<i32: 0>} : vector<18x256xi32>
    %c0 = arith.constant 0 : index
    %c0_0 = arith.constant 0 : index
    %1 = vector.load %arg2[%c0, %c0_0] : memref<3x256xi32, #tpu.memory_space<vmem>>, vector<1x256xi32>
    %c0_i32 = arith.constant 0 : i32
    %c5_i32 = arith.constant 5 : i32
    %2 = vector.broadcast %c0_i32 : i32 to vector<1x256xi32>
    %3 = arith.maxsi %2, %1 : vector<1x256xi32>
    %4 = vector.broadcast %c5_i32 : i32 to vector<1x256xi32>
    %5 = arith.minsi %4, %3 : vector<1x256xi32>
    %c0_i32_1 = arith.constant 0 : i32
    %6 = vector.broadcast %c0_i32_1 : i32 to vector<1x256xi32>
    %7 = arith.addi %5, %6 : vector<1x256xi32>
    %8 = vector.broadcast %7 : vector<1x256xi32> to vector<18x256xi32>
    %9 = arith.cmpi eq, %0, %8 : vector<18x256xi32>
    %c1 = arith.constant 1 : index
    %c0_2 = arith.constant 0 : index
    %10 = vector.load %arg2[%c1, %c0_2] : memref<3x256xi32, #tpu.memory_space<vmem>>, vector<1x256xi32>
    %c0_i32_3 = arith.constant 0 : i32
    %c7_i32 = arith.constant 7 : i32
    %11 = vector.broadcast %c0_i32_3 : i32 to vector<1x256xi32>
    %12 = arith.maxsi %11, %10 : vector<1x256xi32>
    %13 = vector.broadcast %c7_i32 : i32 to vector<1x256xi32>
    %14 = arith.minsi %13, %12 : vector<1x256xi32>
    %c6_i32 = arith.constant 6 : i32
    %15 = vector.broadcast %c6_i32 : i32 to vector<1x256xi32>
    %16 = arith.addi %14, %15 : vector<1x256xi32>
    %17 = vector.broadcast %16 : vector<1x256xi32> to vector<18x256xi32>
    %18 = arith.cmpi eq, %0, %17 : vector<18x256xi32>
    %19 = arith.ori %9, %18 : vector<18x256xi1>
    %c2 = arith.constant 2 : index
    %c0_4 = arith.constant 0 : index
    %20 = vector.load %arg2[%c2, %c0_4] : memref<3x256xi32, #tpu.memory_space<vmem>>, vector<1x256xi32>
    %c0_i32_5 = arith.constant 0 : i32
    %c3_i32 = arith.constant 3 : i32
    %21 = vector.broadcast %c0_i32_5 : i32 to vector<1x256xi32>
    %22 = arith.maxsi %21, %20 : vector<1x256xi32>
    %23 = vector.broadcast %c3_i32 : i32 to vector<1x256xi32>
    %24 = arith.minsi %23, %22 : vector<1x256xi32>
    %c14_i32 = arith.constant 14 : i32
    %25 = vector.broadcast %c14_i32 : i32 to vector<1x256xi32>
    %26 = arith.addi %24, %25 : vector<1x256xi32>
    %27 = vector.broadcast %26 : vector<1x256xi32> to vector<18x256xi32>
    %28 = arith.cmpi eq, %0, %27 : vector<18x256xi32>
    %29 = arith.ori %19, %28 : vector<18x256xi1>
    %c0_6 = arith.constant 0 : index
    %c0_7 = arith.constant 0 : index
    %30 = vector.load %arg1[%c0_6, %c0_7] : memref<8x256xf32, #tpu.memory_space<vmem>>, vector<8x256xf32>
    %31 = arith.extui %29 : vector<18x256xi1> to vector<18x256xi32>
    %32 = arith.sitofp %31 : vector<18x256xi32> to vector<18x256xf32>
    %33 = tpu.concatenate %30, %32 in 0 : vector<8x256xf32>, vector<18x256xf32> -> vector<26x256xf32>
    %c0_8 = arith.constant 0 : index
    %c0_9 = arith.constant 0 : index
    %34 = vector.load %arg3[%c0_8, %c0_9] : memref<32x26xf32, #tpu.memory_space<vmem>>, vector<32x26xf32>
    %cst = arith.constant dense<0.000000e+00> : vector<32x256xf32>
    %35 = tpu.matmul %34, %33, %cst {dimension_numbers = #tpu.dot_dimension_numbers<[1], [0], [0], [1], [0, 0, 1, 1], [], []>, precision = #tpu.contract_precision<fp32>} : vector<32x26xf32>, vector<26x256xf32>, vector<32x256xf32> -> vector<32x256xf32>
    %c0_10 = arith.constant 0 : index
    %c0_11 = arith.constant 0 : index
    %36 = vector.load %arg4[%c0_10, %c0_11] : memref<32x1xf32, #tpu.memory_space<vmem>>, vector<32x1xf32>
    %37 = vector.broadcast %36 : vector<32x1xf32> to vector<32x256xf32>
    %38 = arith.addf %35, %37 : vector<32x256xf32>
    %39 = math.tanh %38 : vector<32x256xf32>
    %c0_12 = arith.constant 0 : index
    %c0_13 = arith.constant 0 : index
    %40 = vector.load %arg5[%c0_12, %c0_13] : memref<16x32xf32, #tpu.memory_space<vmem>>, vector<16x32xf32>
    %cst_14 = arith.constant dense<0.000000e+00> : vector<16x256xf32>
    %41 = tpu.matmul %40, %39, %cst_14 {dimension_numbers = #tpu.dot_dimension_numbers<[1], [0], [0], [1], [0, 0, 1, 1], [], []>, precision = #tpu.contract_precision<fp32>} : vector<16x32xf32>, vector<32x256xf32>, vector<16x256xf32> -> vector<16x256xf32>
    %c0_15 = arith.constant 0 : index
    %c0_16 = arith.constant 0 : index
    %42 = vector.load %arg6[%c0_15, %c0_16] : memref<16x1xf32, #tpu.memory_space<vmem>>, vector<16x1xf32>
    %43 = vector.broadcast %42 : vector<16x1xf32> to vector<16x256xf32>
    %44 = arith.addf %41, %43 : vector<16x256xf32>
    %cst_17 = arith.constant 0.000000e+00 : f32
    %45 = vector.broadcast %cst_17 : f32 to vector<16x256xf32>
    %46 = arith.maximumf %44, %45 : vector<16x256xf32>
    %c0_18 = arith.constant 0 : index
    %c0_19 = arith.constant 0 : index
    %47 = vector.load %arg7[%c0_18, %c0_19] : memref<16x1xf32, #tpu.memory_space<vmem>>, vector<16x1xf32>
    %48 = vector.broadcast %47 : vector<16x1xf32> to vector<16x256xf32>
    %49 = arith.mulf %46, %48 : vector<16x256xf32>
    %cst_20 = arith.constant dense<0.000000e+00> : vector<256xf32>
    %50 = vector.multi_reduction <add>, %49, %cst_20 [0] : vector<16x256xf32> to vector<256xf32>
    %51 = vector.shape_cast %50 : vector<256xf32> to vector<1x256xf32>
    %c0_21 = arith.constant 0 : index
    %c0_22 = arith.constant 0 : index
    %52 = vector.load %arg8[%c0_21, %c0_22] : memref<1x1xf32, #tpu.memory_space<vmem>>, vector<1x1xf32>
    %53 = vector.broadcast %52 : vector<1x1xf32> to vector<1x256xf32>
    %54 = arith.addf %51, %53 : vector<1x256xf32>
    %cst_23 = arith.constant 0.000000e+00 : f32
    %55 = vector.broadcast %cst_23 : f32 to vector<1x256xf32>
    %56 = arith.maximumf %54, %55 : vector<1x256xf32>
    %57 = math.absf %54 : vector<1x256xf32>
    %cst_24 = arith.constant 0.000000e+00 : f32
    %58 = vector.broadcast %cst_24 : f32 to vector<1x256xf32>
    %59 = arith.subf %58, %57 : vector<1x256xf32>
    %60 = math.exp %59 : vector<1x256xf32>
    %61 = math.log1p %60 : vector<1x256xf32>
    %62 = arith.addf %56, %61 : vector<1x256xf32>
    %c0_25 = arith.constant 0 : index
    %c0_26 = arith.constant 0 : index
    %63 = vector.load %arg9[%c0_25, %c0_26] : memref<1x256xf32, #tpu.memory_space<vmem>>, vector<1x256xf32>
    tpu.vector_store %arg9[%c0_25, %c0_26], %62 {strides = array<i32>} : memref<1x256xf32, #tpu.memory_space<vmem>>, vector<1x256xf32>,
    return
  }
  func.func @transform_0(%arg0: i32) -> (i32, i32) {
    %c0_i32 = arith.constant 0 : i32
    %c0_i32_0 = arith.constant 0 : i32
    return %c0_i32, %arg0 : i32, i32
  }
  func.func @transform_1(%arg0: i32) -> (i32, i32) {
    %c0_i32 = arith.constant 0 : i32
    %c0_i32_0 = arith.constant 0 : i32
    return %c0_i32, %arg0 : i32, i32
  }
  func.func @transform_2(%arg0: i32) -> (i32, i32) {
    %c0_i32 = arith.constant 0 : i32
    %c0_i32_0 = arith.constant 0 : i32
    %c0_i32_1 = arith.constant 0 : i32
    return %c0_i32, %c0_i32_0 : i32, i32
  }
  func.func @transform_3(%arg0: i32) -> (i32, i32) {
    %c0_i32 = arith.constant 0 : i32
    %c0_i32_0 = arith.constant 0 : i32
    %c0_i32_1 = arith.constant 0 : i32
    return %c0_i32, %c0_i32_0 : i32, i32
  }
  func.func @transform_4(%arg0: i32) -> (i32, i32) {
    %c0_i32 = arith.constant 0 : i32
    %c0_i32_0 = arith.constant 0 : i32
    %c0_i32_1 = arith.constant 0 : i32
    return %c0_i32, %c0_i32_0 : i32, i32
  }
  func.func @transform_5(%arg0: i32) -> (i32, i32) {
    %c0_i32 = arith.constant 0 : i32
    %c0_i32_0 = arith.constant 0 : i32
    %c0_i32_1 = arith.constant 0 : i32
    return %c0_i32, %c0_i32_0 : i32, i32
  }
  func.func @transform_6(%arg0: i32) -> (i32, i32) {
    %c0_i32 = arith.constant 0 : i32
    %c0_i32_0 = arith.constant 0 : i32
    %c0_i32_1 = arith.constant 0 : i32
    return %c0_i32, %c0_i32_0 : i32, i32
  }
  func.func @transform_7(%arg0: i32) -> (i32, i32) {
    %c0_i32 = arith.constant 0 : i32
    %c0_i32_0 = arith.constant 0 : i32
    %c0_i32_1 = arith.constant 0 : i32
    return %c0_i32, %c0_i32_0 : i32, i32
  }
  func.func @transform_8(%arg0: i32) -> (i32, i32) {
    %c0_i32 = arith.constant 0 : i32
    %c0_i32_0 = arith.constant 0 : i32
    return %c0_i32, %arg0 : i32, i32
  }
}

</mosaic_0001>

<llo_original>
// kernel: tpu_custom_call.1
$region0: #{tpu_custom_call.1}
  #allocation0 [shape = 'u32[]', space=smem, size = 0x4, offset = 0x4, fixed_abs, tag = 'smem constant byte address 0x4 - core index']
  #allocation1 [shape = 'u32[72,128]{1,0:T(1,128)}', space=vmem, size = 0x9000, scoped, tag = 'internal scratch']
  #allocation2 [shape = 'f32[1,1]{1,0:T(1,128)S(1)}', space=vmem, size = 0x200, scoped, tag = 'scoped memory for tpu_custom_call.1']
  %s0 = inlined_call_operand.hbm [shape: f32[8,1024], index: 0, kind: input, shape index: {}]
  %s1 = inlined_call_operand.vmem [shape: s32[3,1024], index: 1, kind: input, shape index: {}]
  %s2 = inlined_call_operand.vmem [shape: f32[32,26], index: 2, kind: input, shape index: {}]
  %s3 = inlined_call_operand.vmem [shape: f32[32,1], index: 3, kind: input, shape index: {}]
  %s4 = inlined_call_operand.hbm [shape: f32[16,32], index: 4, kind: input, shape index: {}]
  %s5 = inlined_call_operand.vmem [shape: f32[16,1], index: 5, kind: input, shape index: {}]
  %s6 = inlined_call_operand.vmem [shape: f32[16,1], index: 6, kind: input, shape index: {}]
  %s7 = inlined_call_operand.<no memory space> [shape: f32[1,1], index: 7, kind: input, shape index: {}]
  %s8 = inlined_call_operand.hbm [shape: f32[1,1024], index: 8, kind: output, shape index: {}]
  %s9 = sld [smem:[#allocation0]]
  $region73: #{tpu_custom_call.1} parent=0
    _
  %s11 = ssub.s32 1, %s9
  %s12 = scalar_select 0, %s11, %s9
  %v13 = vstv %s7
  %14 = vst [vmem:[#allocation2] sm:$0x1] %v13
  $region1: #{tpu_custom_call.1} parent=0
    #allocation3 [shape = 'u8[16384]{0}', space=vmem, size = 0x4000, scoped, tag = 'input window, operand 0']
    #allocation4 [shape = 's32[2]{0}', space=sflag, size = 0x8, scoped, tag = 'scoped memory for tpu_custom_call.1']
    #allocation5 [shape = 's32[2]{0}', space=sflag, size = 0x8, scoped, tag = 'scoped memory for tpu_custom_call.1']
    #allocation6 [shape = 'u8[8192]{0}', space=vmem, size = 0x2000, scoped, tag = 'input window, operand 4, single buffered']
    #allocation7 [shape = 's32[1]{0}', space=sflag, size = 0x4, scoped, tag = 'scoped memory for tpu_custom_call.1']
    #allocation8 [shape = 'u8[2048]{0}', space=vmem, size = 0x800, scoped, tag = 'output window, operand 0']
    %15 = vsyncpa [#allocation4], 0
    %s16 = scalar_lea.sflag [#allocation4], 1
    %17 = vsyncpa %s16, 0
    %18 = vsyncpa [#allocation7], 0
    %19 = vsyncpa [#allocation5], 0
    %s20 = scalar_lea.sflag [#allocation5], 1
    %21 = vsyncpa %s20, 0
    loop: start=0, step=1, limit=6
    $region2: #{tpu_custom_call.1} parent=1 // loop_pre_header
      _
    $region3: #{tpu_custom_call.1} parent=1 // loop_header
      %s23 = sphi 0, %s27
      %p24 = scmp.ge.s32.totalorder %s23, 6
      %s33 = sphi 0, %s35
      %s36 = sphi 0, %s33
      %s37 = sphi 0, %s36
      %s53 = sphi 0, %s37
      %s59 = sphi 0, %s61
      %s62 = sphi 0, %s59
      %s63 = sphi 0, %s62
      %s79 = sphi 0, %s63
      %s83 = sphi 0, %s83
      %s85 = sphi 0, %s83
      %s86 = sphi 0, %s85
      %s100 = sphi 0, %s86
      %s104 = sphi 0, %s104
      %s106 = sphi 0, %s104
      %s107 = sphi 0, %s106
      %s121 = sphi 0, %s107
      %s125 = sphi 0, %s125
      %s127 = sphi 0, %s125
      %s128 = sphi 0, %s127
      %s142 = sphi 0, %s128
      %s146 = sphi 0, %s146
      %s148 = sphi 0, %s146
      %s149 = sphi 0, %s148
      %s163 = sphi 0, %s149
      %s167 = sphi 0, %s167
      %s169 = sphi 0, %s167
      %s170 = sphi 0, %s169
      %s184 = sphi 0, %s170
      %s188 = sphi 0, %s188
      %s190 = sphi 0, %s188
      %s191 = sphi 0, %s190
      %s205 = sphi 0, %s191
      %s211 = sphi 0, %s213
      %s214 = sphi 0, %s211
      %s215 = sphi 0, %s214
      %s231 = sphi 0, %s215
    $region4: #{tpu_custom_call.1} parent=1 // loop_header_branch
      %26 = sbr.rel (%p24) target = $region8
    $region5: #{tpu_custom_call.1} parent=1 // loop_body
      %s28 = ssub.s32 %s23, 1
      %s29 = ssub.s32 %s23, 2
      %s30 = sadd.s32 %s23, 1
      %s31 = ssub.s32 %s23, %s30
      %p32 = scmp.eq.s32.totalorder %s31, 0
      %s34 = sadd.s32 %s33, 1
      %s35 = scalar_select %p32, %s33, %s34
      %p38 = pneg %p32
      %p39 = scmp.eq.s32.totalorder %s23, 3
      %p40 = por %p38, %p39
      %p41 = scmp.ne.s32.totalorder %s33, %s36
      %p42 = scmp.eq.s32.totalorder %s23, 0
      %p43 = por %p41, %p42
      %p44 = scmp.ne.s32.totalorder %s33, %s36
      %p45 = scmp.eq.s32.totalorder %s28, 3
      %p46 = por %p44, %p45
      %p47 = scmp.ne.s32.totalorder %s36, %s37
      %p48 = scmp.eq.s32.totalorder %s28, 0
      %p49 = por %p47, %p48
      %p50 = scmp.ne.s32.totalorder %s36, %s37
      %p51 = scmp.eq.s32.totalorder %s29, 3
      %p52 = por %p50, %p51
      %p54 = scmp.ne.s32.totalorder %s37, %s53
      %p55 = scmp.eq.s32.totalorder %s29, 0
      %p56 = por %p54, %p55
      %s57 = ssub.s32 %s23, %s30
      %p58 = scmp.eq.s32.totalorder %s57, 0
      %s60 = sadd.s32 %s59, 1
      %s61 = scalar_select %p58, %s59, %s60
      %p64 = pneg %p58
      %p65 = scmp.eq.s32.totalorder %s23, 3
      %p66 = por %p64, %p65
      %p67 = scmp.ne.s32.totalorder %s59, %s62
      %p68 = scmp.eq.s32.totalorder %s23, 0
      %p69 = por %p67, %p68
      %p70 = scmp.ne.s32.totalorder %s59, %s62
      %p71 = scmp.eq.s32.totalorder %s28, 3
      %p72 = por %p70, %p71
      %p73 = scmp.ne.s32.totalorder %s62, %s63
      %p74 = scmp.eq.s32.totalorder %s28, 0
      %p75 = por %p73, %p74
      %p76 = scmp.ne.s32.totalorder %s62, %s63
      %p77 = scmp.eq.s32.totalorder %s29, 3
      %p78 = por %p76, %p77
      %p80 = scmp.ne.s32.totalorder %s63, %s79
      %p81 = scmp.eq.s32.totalorder %s29, 0
      %p82 = por %p80, %p81
      %s84 = sadd.s32 %s83, 1
      %p87 = scmp.eq.s32.totalorder %s23, 3
      %p88 = scmp.ne.s32.totalorder %s83, %s85
      %p89 = scmp.eq.s32.totalorder %s23, 0
      %p90 = por %p88, %p89
      %p91 = scmp.ne.s32.totalorder %s83, %s85
      %p92 = scmp.eq.s32.totalorder %s28, 3
      %p93 = por %p91, %p92
      %p94 = scmp.ne.s32.totalorder %s85, %s86
      %p95 = scmp.eq.s32.totalorder %s28, 0
      %p96 = por %p94, %p95
      %p97 = scmp.ne.s32.totalorder %s85, %s86
      %p98 = scmp.eq.s32.totalorder %s29, 3
      %p99 = por %p97, %p98
      %p101 = scmp.ne.s32.totalorder %s86, %s100
      %p102 = scmp.eq.s32.totalorder %s29, 0
      %p103 = por %p101, %p102
      %s105 = sadd.s32 %s104, 1
      %p108 = scmp.eq.s32.totalorder %s23, 3
      %p109 = scmp.ne.s32.totalorder %s104, %s106
      %p110 = scmp.eq.s32.totalorder %s23, 0
      %p111 = por %p109, %p110
      %p112 = scmp.ne.s32.totalorder %s104, %s106
      %p113 = scmp.eq.s32.totalorder %s28, 3
      %p114 = por %p112, %p113
      %p115 = scmp.ne.s32.totalorder %s106, %s107
      %p116 = scmp.eq.s32.totalorder %s28, 0
      %p117 = por %p115, %p116
      %p118 = scmp.ne.s32.totalorder %s106, %s107
      %p119 = scmp.eq.s32.totalorder %s29, 3
      %p120 = por %p118, %p119
      %p122 = scmp.ne.s32.totalorder %s107, %s121
      %p123 = scmp.eq.s32.totalorder %s29, 0
      %p124 = por %p122, %p123
      %s126 = sadd.s32 %s125, 1
      %p129 = scmp.eq.s32.totalorder %s23, 3
      %p130 = scmp.ne.s32.totalorder %s125, %s127
      %p131 = scmp.eq.s32.totalorder %s23, 0
      %p132 = por %p130, %p131
      %p133 = scmp.ne.s32.totalorder %s125, %s127
      %p134 = scmp.eq.s32.totalorder %s28, 3
      %p135 = por %p133, %p134
      %p136 = scmp.ne.s32.totalorder %s127, %s128
      %p137 = scmp.eq.s32.totalorder %s28, 0
      %p138 = por %p136, %p137
      %p139 = scmp.ne.s32.totalorder %s127, %s128
      %p140 = scmp.eq.s32.totalorder %s29, 3
      %p141 = por %p139, %p140
      %p143 = scmp.ne.s32.totalorder %s128, %s142
      %p144 = scmp.eq.s32.totalorder %s29, 0
      %p145 = por %p143, %p144
      %s147 = sadd.s32 %s146, 1
      %p150 = scmp.eq.s32.totalorder %s23, 3
      %p151 = scmp.ne.s32.totalorder %s146, %s148
      %p152 = scmp.eq.s32.totalorder %s23, 0
      %p153 = por %p151, %p152
      %p154 = scmp.ne.s32.totalorder %s146, %s148
      %p155 = scmp.eq.s32.totalorder %s28, 3
      %p156 = por %p154, %p155
      %p157 = scmp.ne.s32.totalorder %s148, %s149
      %p158 = scmp.eq.s32.totalorder %s28, 0
      %p159 = por %p157, %p158
      %p160 = scmp.ne.s32.totalorder %s148, %s149
      %p161 = scmp.eq.s32.totalorder %s29, 3
      %p162 = por %p160, %p161
      %p164 = scmp.ne.s32.totalorder %s149, %s163
      %p165 = scmp.eq.s32.totalorder %s29, 0
      %p166 = por %p164, %p165
      %s168 = sadd.s32 %s167, 1
      %p171 = scmp.eq.s32.totalorder %s23, 3
      %p172 = scmp.ne.s32.totalorder %s167, %s169
      %p173 = scmp.eq.s32.totalorder %s23, 0
      %p174 = por %p172, %p173
      %p175 = scmp.ne.s32.totalorder %s167, %s169
      %p176 = scmp.eq.s32.totalorder %s28, 3
      %p177 = por %p175, %p176
      %p178 = scmp.ne.s32.totalorder %s169, %s170
      %p179 = scmp.eq.s32.totalorder %s28, 0
      %p180 = por %p178, %p179
      %p181 = scmp.ne.s32.totalorder %s169, %s170
      %p182 = scmp.eq.s32.totalorder %s29, 3
      %p183 = por %p181, %p182
      %p185 = scmp.ne.s32.totalorder %s170, %s184
      %p186 = scmp.eq.s32.totalorder %s29, 0
      %p187 = por %p185, %p186
      %s189 = sadd.s32 %s188, 1
      %p192 = scmp.eq.s32.totalorder %s23, 3
      %p193 = scmp.ne.s32.totalorder %s188, %s190
      %p194 = scmp.eq.s32.totalorder %s23, 0
      %p195 = por %p193, %p194
      %p196 = scmp.ne.s32.totalorder %s188, %s190
      %p197 = scmp.eq.s32.totalorder %s28, 3
      %p198 = por %p196, %p197
      %p199 = scmp.ne.s32.totalorder %s190, %s191
      %p200 = scmp.eq.s32.totalorder %s28, 0
      %p201 = por %p199, %p200
      %p202 = scmp.ne.s32.totalorder %s190, %s191
      %p203 = scmp.eq.s32.totalorder %s29, 3
      %p204 = por %p202, %p203
      %p206 = scmp.ne.s32.totalorder %s191, %s205
      %p207 = scmp.eq.s32.totalorder %s29, 0
      %p208 = por %p206, %p207
      %s209 = ssub.s32 %s23, %s30
      %p210 = scmp.eq.s32.totalorder %s209, 0
      %s212 = sadd.s32 %s211, 1
      %s213 = scalar_select %p210, %s211, %s212
      %p216 = pneg %p210
      %p217 = scmp.eq.s32.totalorder %s23, 3
      %p218 = por %p216, %p217
      %p219 = scmp.ne.s32.totalorder %s211, %s214
      %p220 = scmp.eq.s32.totalorder %s23, 0
      %p221 = por %p219, %p220
      %p222 = scmp.ne.s32.totalorder %s211, %s214
      %p223 = scmp.eq.s32.totalorder %s28, 3
      %p224 = por %p222, %p223
      %p225 = scmp.ne.s32.totalorder %s214, %s215
      %p226 = scmp.eq.s32.totalorder %s28, 0
      %p227 = por %p225, %p226
      %p228 = scmp.ne.s32.totalorder %s214, %s215
      %p229 = scmp.eq.s32.totalorder %s29, 3
      %p230 = por %p228, %p229
      %p232 = scmp.ne.s32.totalorder %s215, %s231
      %p233 = scmp.eq.s32.totalorder %s29, 0
      %p234 = por %p232, %p233
      %p235 = scmp.le.s32.totalorder 1, %s23
      %p236 = scmp.lt.s32.totalorder %s23, 5
      %p237 = pnand %p235, %p236
      %p238 = pneg %p237
      // Predicated region
      $region9: #{tpu_custom_call.1} parent=5 // pred_check
        _
      $region10: #{tpu_custom_call.1} parent=5 // pred_check_branch
        %240 = sbr.rel (%p237) target = $region12
      $region11: #{tpu_custom_call.1} parent=5 // pred_region
        %s241 = ssub.s32 %s23, 1
        // Predicated region
        $region13: #{tpu_custom_call.1} parent=11 // pred_check
          %p242 = pneg %p96
        $region14: #{tpu_custom_call.1} parent=11 // pred_check_branch
          %244 = sbr.rel (%p242) target = $region16
        $region15: #{tpu_custom_call.1} parent=11 // pred_region
          _
        $region16: #{tpu_custom_call.1} parent=11 // pred_fallthru
          _
        // Predicated region
        $region17: #{tpu_custom_call.1} parent=11 // pred_check
          %p245 = pneg %p117
        $region18: #{tpu_custom_call.1} parent=11 // pred_check_branch
          %247 = sbr.rel (%p245) target = $region20
        $region19: #{tpu_custom_call.1} parent=11 // pred_region
          _
        $region20: #{tpu_custom_call.1} parent=11 // pred_fallthru
          _
        // Predicated region
        $region21: #{tpu_custom_call.1} parent=11 // pred_check
          %p248 = pneg %p138
        $region22: #{tpu_custom_call.1} parent=11 // pred_check_branch
          %250 = sbr.rel (%p248) target = $region24
        $region23: #{tpu_custom_call.1} parent=11 // pred_region
          %252 = vsyncadd [#allocation7], 0
          %s253 = sshll.u32 %s4, 4
          %s254 = int_to_ptr.hbm [resolvable:$true] %s253
          %s255 = sshll.u32 [#allocation6], 4
          %s256 = int_to_ptr.vmem [resolvable:$true] %s255
          %261 = dma.hbm_to_vmem [thread:$0]  %s254, 256, %s256, [#allocation7], 128, 128, 8
        $region24: #{tpu_custom_call.1} parent=11 // pred_fallthru
          _
        // Predicated region
        $region25: #{tpu_custom_call.1} parent=11 // pred_check
          %p262 = pneg %p159
        $region26: #{tpu_custom_call.1} parent=11 // pred_check_branch
          %264 = sbr.rel (%p262) target = $region28
        $region27: #{tpu_custom_call.1} parent=11 // pred_region
          _
        $region28: #{tpu_custom_call.1} parent=11 // pred_fallthru
          _
        // Predicated region
        $region29: #{tpu_custom_call.1} parent=11 // pred_check
          %p265 = pneg %p180
        $region30: #{tpu_custom_call.1} parent=11 // pred_check_branch
          %267 = sbr.rel (%p265) target = $region32
        $region31: #{tpu_custom_call.1} parent=11 // pred_region
          _
        $region32: #{tpu_custom_call.1} parent=11 // pred_fallthru
          _
        // Predicated region
        $region33: #{tpu_custom_call.1} parent=11 // pred_check
          %p268 = pneg %p201
        $region34: #{tpu_custom_call.1} parent=11 // pred_check_branch
          %270 = sbr.rel (%p268) target = $region36
        $region35: #{tpu_custom_call.1} parent=11 // pred_region
          _
        $region36: #{tpu_custom_call.1} parent=11 // pred_fallthru
          _
      $region12: #{tpu_custom_call.1} parent=5 // pred_fallthru
        _
      %p271 = scmp.lt.s32.totalorder %s23, 4
      // Predicated region
      $region37: #{tpu_custom_call.1} parent=5 // pred_check
        %p272 = pneg %p271
      $region38: #{tpu_custom_call.1} parent=5 // pred_check_branch
        %274 = sbr.rel (%p272) target = $region40
      $region39: #{tpu_custom_call.1} parent=5 // pred_region
        // Predicated region
        $region41: #{tpu_custom_call.1} parent=39 // pred_check
          %p275 = pneg %p43
        $region42: #{tpu_custom_call.1} parent=39 // pred_check_branch
          %277 = sbr.rel (%p275) target = $region44
        $region43: #{tpu_custom_call.1} parent=39 // pred_region
          %s278 = sand.u32 %s33, 1
          %s279 = scalar_lea.sflag [#allocation4], %s278
          %s280 = sand.u32 %s33, 1
          %s281 = smul.addr %s280, 16
          %s282 = scalar_lea.vmem [#allocation3], %s281
          %s283 = smul.u32 2, %s23
          %285 = vsyncadd %s279, 0
          %s286 = smul.addr %s283, 8
          %s287 = scalar_lea.hbm %s0, %s286
          %s289 = sshll.u32 %s287, 4
          %s290 = int_to_ptr.hbm [resolvable:$true] %s289
          %s291 = sshll.u32 %s282, 4
          %s292 = int_to_ptr.vmem [resolvable:$true] %s291
          %294 = dma.hbm_to_vmem [thread:$0]  %s290, 256, %s292, %s279
        $region44: #{tpu_custom_call.1} parent=39 // pred_fallthru
          _
        // Predicated region
        $region45: #{tpu_custom_call.1} parent=39 // pred_check
          %p295 = pneg %p69
        $region46: #{tpu_custom_call.1} parent=39 // pred_check_branch
          %297 = sbr.rel (%p295) target = $region48
        $region47: #{tpu_custom_call.1} parent=39 // pred_region
          %s298 = smul.u32 2, %s23
          %p299 = scmp.lt.s32.totalorder %s298, 7
          %s300 = scalar_select %p299, %s298, 7
          %s301 = smul.addr %s300, 4
          %s302 = scalar_lea.vmem %s1, %s301
          %s303 = smul.u32 2, %s23
        $region48: #{tpu_custom_call.1} parent=39 // pred_fallthru
          _
      $region40: #{tpu_custom_call.1} parent=5 // pred_fallthru
        _
      %p304 = scmp.le.s32.totalorder 1, %s23
      %p305 = scmp.lt.s32.totalorder %s23, 5
      %p306 = pnand %p304, %p305
      %p307 = pneg %p306
      // Predicated region
      $region49: #{tpu_custom_call.1} parent=5 // pred_check
        _
      $region50: #{tpu_custom_call.1} parent=5 // pred_check_branch
        %309 = sbr.rel (%p306) target = $region52
      $region51: #{tpu_custom_call.1} parent=5 // pred_region
        %s310 = ssub.s32 %s23, 1
        %s311 = sand.u32 %s36, 1
        %s312 = scalar_lea.sflag [#allocation4], %s311
        %s313 = sand.u32 %s36, 1
        %s314 = smul.addr %s313, 16
        %s315 = scalar_lea.vmem [#allocation3], %s314
        // Predicated region
        $region53: #{tpu_custom_call.1} parent=51 // pred_check
          %p316 = pneg %p49
        $region54: #{tpu_custom_call.1} parent=51 // pred_check_branch
          %318 = sbr.rel (%p316) target = $region56
        $region55: #{tpu_custom_call.1} parent=51 // pred_region
          %320 = dma.done %s312, 256
        $region56: #{tpu_custom_call.1} parent=51 // pred_fallthru
          _
        // Predicated region
        $region57: #{tpu_custom_call.1} parent=51 // pred_check
          %p321 = pneg %p138
        $region58: #{tpu_custom_call.1} parent=51 // pred_check_branch
          %323 = sbr.rel (%p321) target = $region60
        $region59: #{tpu_custom_call.1} parent=51 // pred_region
          %325 = dma.done [#allocation7], 256
        $region60: #{tpu_custom_call.1} parent=51 // pred_fallthru
          _
        %s326 = sand.u32 %s36, 1
        %s327 = scalar_lea.sflag [#allocation4], %s326
        %s328 = sand.u32 %s36, 1
        %s329 = smul.addr %s328, 16
        %s330 = scalar_lea.vmem [#allocation3], %s329
        %p331 = pneg %p49
        %p332 = pneg %p46
        %s333 = smul.u32 2, %s28
        %p334 = scmp.lt.s32.totalorder %s333, 7
        %s335 = scalar_select %p334, %s333, 7
        %s336 = smul.addr %s335, 4
        %s337 = scalar_lea.vmem %s1, %s336
        %p338 = pneg %p75
        %p339 = pneg %p72
        %p340 = pneg %p96
        %p341 = pneg %p93
        %p342 = pneg %p117
        %p343 = pneg %p114
        %p344 = pneg %p138
        %p345 = pneg %p135
        %p346 = pneg %p159
        %p347 = pneg %p156
        %p348 = pneg %p180
        %p349 = pneg %p177
        %p350 = pneg %p201
        %p351 = pneg %p198
        %p352 = pneg %p227
        %p353 = pneg %p224
        %s354 = sand.u32 %s214, 1
        %s355 = scalar_lea.sflag [#allocation5], %s354
        %s356 = sand.u32 %s214, 1
        %s357 = smul.addr %s356, 2
        %s358 = scalar_lea.vmem [#allocation8], %s357
        %s359 = smul.u32 2, %s28
        %s360 = smul.u32 2, %s28
        %p361 = scmp.lt.s32.totalorder %s360, 7
        %s362 = scalar_select %p361, %s360, 7
        %s363 = smul.addr %s362, 4
        %s364 = scalar_lea.vmem %s1, %s363
        %s365 = smul.u32 2, %s28
        %s366 = smul.u32 2, %s28
        %v367 = vlaneseq
        %v368 = vshrl.u32 %v367, 7
        %v369 = vadd.s32 %v368, 8
        %v370 = vadd.s32 %v368, 16
        %v371 = vld [vmem:[%s364] ss:$4 sm:$0x3]
        %vm372 = vcmp.gt.s32.totalorder %v371, 0
        %v373 = vsel %vm372, %v371, 0
        %vm374 = vcmp.lt.s32.totalorder %v373, 5
        %v375 = vsel %vm374, %v373, 5
        %v376 = vperm.slane %v375, 0
        %v377 = vperm.slane %v375, 1
        %vm378 = vcmp.eq.s32.totalorder %v368, %v376
        %vm379 = vcmp.eq.s32.totalorder %v368, %v377
        %vm380 = vcmp.eq.s32.totalorder %v369, %v376
        %vm381 = vcmp.eq.s32.totalorder %v369, %v377
        %vm382 = vcmp.eq.s32.totalorder %v370, %v376
        %vm383 = vcmp.eq.s32.totalorder %v370, %v377
        %s384 = scalar_lea.vmem %s364, 1
        %v385 = vld [vmem:[%s384] ss:$4 sm:$0x3]
        %vm386 = vcmp.gt.s32.totalorder %v385, 0
        %v387 = vsel %vm386, %v385, 0
        %vm388 = vcmp.lt.s32.totalorder %v387, 7
        %v389 = vsel %vm388, %v387, 7
        %v390 = vadd.s32 %v389, 6
        %v391 = vperm.slane %v390, 0
        %v392 = vperm.slane %v390, 1
        %vm393 = vcmp.eq.s32.totalorder %v368, %v391
        %vm394 = vcmp.eq.s32.totalorder %v368, %v392
        %vm395 = vcmp.eq.s32.totalorder %v369, %v391
        %vm396 = vcmp.eq.s32.totalorder %v369, %v392
        %vm397 = vcmp.eq.s32.totalorder %v370, %v391
        %vm398 = vcmp.eq.s32.totalorder %v370, %v392
        %vm399 = vmor %vm378, %vm393
        %vm400 = vmor %vm379, %vm394
        %vm401 = vmor %vm380, %vm395
        %vm402 = vmor %vm381, %vm396
        %vm403 = vmor %vm382, %vm397
        %vm404 = vmor %vm383, %vm398
        %s405 = scalar_lea.vmem %s364, 2
        %v406 = vld [vmem:[%s405] ss:$4 sm:$0x3]
        %vm407 = vcmp.gt.s32.totalorder %v406, 0
        %v408 = vsel %vm407, %v406, 0
        %vm409 = vcmp.lt.s32.totalorder %v408, 3
        %v410 = vsel %vm409, %v408, 3
        %v411 = vadd.s32 %v410, 14
        %v412 = vperm.slane %v411, 0
        %v413 = vperm.slane %v411, 1
        %vm414 = vcmp.eq.s32.totalorder %v368, %v412
        %vm415 = vcmp.eq.s32.totalorder %v368, %v413
        %vm416 = vcmp.eq.s32.totalorder %v369, %v412
        %vm417 = vcmp.eq.s32.totalorder %v369, %v413
        %vm418 = vcmp.eq.s32.totalorder %v370, %v412
        %vm419 = vcmp.eq.s32.totalorder %v370, %v413
        %vm420 = vmor %vm399, %vm414
        %vm421 = vmor %vm400, %vm415
        %vm422 = vmor %vm401, %vm416
        %vm423 = vmor %vm402, %vm417
        %vm424 = vmor %vm403, %vm418
        %vm425 = vmor %vm404, %vm419
        %v426 = vld [vmem:[%s315] sm:$0xff]
        %v427 = vld [vmem:[%s315 + $0x8] sm:$0xff]
        %v428 = vsel %vm420, 1, 0
        %v429 = vsel %vm421, 1, 0
        %v430 = vsel %vm422, 1, 0
        %v431 = vsel %vm423, 1, 0
        %v432 = vsel %vm424, 1, 0
        %v433 = vsel %vm425, 1, 0
        %v434 = vcvt.s32.f32 %v428
        %v435 = vcvt.s32.f32 %v429
        %v436 = vcvt.s32.f32 %v430
        %v437 = vcvt.s32.f32 %v431
        %v438 = vcvt.s32.f32 %v432
        %v439 = vcvt.s32.f32 %v433
        %v440 = vld [vmem:[%s2] sm:$0xff]
        %v441 = vld [vmem:[%s2 + $0x8] sm:$0xff]
        %v442 = vld [vmem:[%s2 + $0x10] sm:$0xff]
        %v443 = vld [vmem:[%s2 + $0x18] sm:$0xff]
        %v444 = vld [vmem:[%s3] sm:$0xff]
        %v445 = vld [vmem:[%s3 + $0x8] sm:$0xff]
        %v446 = vld [vmem:[%s3 + $0x10] sm:$0xff]
        %v447 = vld [vmem:[%s3 + $0x18] sm:$0xff]
        %449 = vset.pattern.permute.xlu0 0
        %450 = vperm.xlu0 %449, %v444
        %v451 = vpop.permute.xlu0 %450
        %454 = vset.pattern.permute.xlu0 0
        %455 = vperm.xlu0 %454, %v445
        %v456 = vpop.permute.xlu0 %455
        %459 = vset.pattern.permute.xlu0 0
        %460 = vperm.xlu0 %459, %v446
        %v461 = vpop.permute.xlu0 %460
        %464 = vset.pattern.permute.xlu0 0
        %465 = vperm.xlu0 %464, %v447
        %v466 = vpop.permute.xlu0 %465
        %vm468 = vcmask 211968
        %v470 = vsel %vm468, %v440, 0
        %v473 = vsel %vm468, %v441, 0
        %v476 = vsel %vm468, %v442, 0
        %v479 = vsel %vm468, %v443, 0
        %vm481 = vcmask 1041408
        %v483 = vsel %vm481, %v438, 0
        %v486 = vsel %vm481, %v439, 0
        %488 = vmatpush.msra.mxu0 0.0
        %489 = vmatpush.msra.mxu0 0.0
        %490 = vmatpush.msra.mxu0 0.0
        %491 = vmatpush.msra.mxu0 0.0
        %492 = vmatpush.msra.mxu0 0.0
        %493 = vmatpush.msra.mxu0 0.0
        %494 = vmatpush.msra.mxu0 0.0
        %495 = vmatpush.msra.mxu0 0.0
        %496 = vmatpush.msra.mxu0 0.0
        %497 = vmatpush.msra.mxu0 0.0
        %498 = vmatpush.msra.mxu0 0.0
        %499 = vmatpush.msra.mxu0 0.0
        %v500 = vand.u32 %v483, 4294901760
        %501 = vmatpush.msra.mxu0 %v500
        %v502 = vand.u32 %v436, 4294901760
        %503 = vmatpush.msra.mxu0 %v502
        %v504 = vand.u32 %v434, 4294901760
        %505 = vmatpush.msra.mxu0 %v504
        %v506 = vand.u32 %v426, 4294901760
        %507 = vmatpush.msra.mxu0 %v506
        %v508 = vand.u32 %v470, 4294901760
        %v509 = vsub.f32 %v470, %v508
        %v510 = vand.u32 %v509, 4294901760
        %v511 = vsub.f32 %v509, %v510
        %v512 = vand.u32 %v511, 4294901760
        %513 = vmatmul.f32.gmra.mxu0 %v512
        %v514 = vpop.f32.mrf.mxu0
        %v515 = vadd.f32 %v451, %v514
        %v516 = vand.u32 %v473, 4294901760
        %v517 = vsub.f32 %v473, %v516
        %v518 = vand.u32 %v517, 4294901760
        %v519 = vsub.f32 %v517, %v518
        %v520 = vand.u32 %v519, 4294901760
        %521 = vmatmul.f32.gmra.mxu0 %v520
        %v522 = vpop.f32.mrf.mxu0
        %v523 = vadd.f32 %v456, %v522
        %v524 = vand.u32 %v476, 4294901760
        %v525 = vsub.f32 %v476, %v524
        %v526 = vand.u32 %v525, 4294901760
        %v527 = vsub.f32 %v525, %v526
        %v528 = vand.u32 %v527, 4294901760
        %529 = vmatmul.f32.gmra.mxu0 %v528
        %v530 = vpop.f32.mrf.mxu0
        %v531 = vadd.f32 %v461, %v530
        %v532 = vand.u32 %v479, 4294901760
        %v533 = vsub.f32 %v479, %v532
        %v534 = vand.u32 %v533, 4294901760
        %v535 = vsub.f32 %v533, %v534
        %v536 = vand.u32 %v535, 4294901760
        %537 = vmatmul.f32.gmra.mxu0 %v536
        %v538 = vpop.f32.mrf.mxu0
        %v539 = vadd.f32 %v466, %v538
        %540 = vdwg.mxu0
        %541 = vmatpush.msra.mxu0 0.0
        %542 = vmatpush.msra.mxu0 0.0
        %543 = vmatpush.msra.mxu0 0.0
        %544 = vmatpush.msra.mxu0 0.0
        %545 = vmatpush.msra.mxu0 0.0
        %546 = vmatpush.msra.mxu0 0.0
        %547 = vmatpush.msra.mxu0 0.0
        %548 = vmatpush.msra.mxu0 0.0
        %549 = vmatpush.msra.mxu0 0.0
        %550 = vmatpush.msra.mxu0 0.0
        %551 = vmatpush.msra.mxu0 0.0
        %552 = vmatpush.msra.mxu0 0.0
        %v553 = vand.u32 %v483, 4294901760
        %v554 = vsub.f32 %v483, %v553
        %v555 = vand.u32 %v554, 4294901760
        %v556 = vsub.f32 %v554, %v555
        %v557 = vand.u32 %v556, 4294901760
        %558 = vmatpush.msra.mxu0 %v557
        %v559 = vand.u32 %v436, 4294901760
        %v560 = vsub.f32 %v436, %v559
        %v561 = vand.u32 %v560, 4294901760
        %v562 = vsub.f32 %v560, %v561
        %v563 = vand.u32 %v562, 4294901760
        %564 = vmatpush.msra.mxu0 %v563
        %v565 = vand.u32 %v434, 4294901760
        %v566 = vsub.f32 %v434, %v565
        %v567 = vand.u32 %v566, 4294901760
        %v568 = vsub.f32 %v566, %v567
        %v569 = vand.u32 %v568, 4294901760
        %570 = vmatpush.msra.mxu0 %v569
        %v571 = vand.u32 %v426, 4294901760
        %v572 = vsub.f32 %v426, %v571
        %v573 = vand.u32 %v572, 4294901760
        %v574 = vsub.f32 %v572, %v573
        %v575 = vand.u32 %v574, 4294901760
        %576 = vmatpush.msra.mxu0 %v575
        %v577 = vand.u32 %v470, 4294901760
        %578 = vmatmul.f32.gmra.mxu0 %v577
        %v579 = vpop.f32.mrf.mxu0
        %v580 = vadd.f32 %v515, %v579
        %v581 = vand.u32 %v473, 4294901760
        %582 = vmatmul.f32.gmra.mxu0 %v581
        %v583 = vpop.f32.mrf.mxu0
        %v584 = vadd.f32 %v523, %v583
        %v585 = vand.u32 %v476, 4294901760
        %586 = vmatmul.f32.gmra.mxu0 %v585
        %v587 = vpop.f32.mrf.mxu0
        %v588 = vadd.f32 %v531, %v587
        %v589 = vand.u32 %v479, 4294901760
        %590 = vmatmul.f32.gmra.mxu0 %v589
        %v591 = vpop.f32.mrf.mxu0
        %v592 = vadd.f32 %v539, %v591
        %593 = vdwg.mxu0
        %594 = vmatpush.msra.mxu0 0.0
        %595 = vmatpush.msra.mxu0 0.0
        %596 = vmatpush.msra.mxu0 0.0
        %597 = vmatpush.msra.mxu0 0.0
        %598 = vmatpush.msra.mxu0 0.0
        %599 = vmatpush.msra.mxu0 0.0
        %600 = vmatpush.msra.mxu0 0.0
        %601 = vmatpush.msra.mxu0 0.0
        %602 = vmatpush.msra.mxu0 0.0
        %603 = vmatpush.msra.mxu0 0.0
        %604 = vmatpush.msra.mxu0 0.0
        %605 = vmatpush.msra.mxu0 0.0
        %v606 = vand.u32 %v483, 4294901760
        %v607 = vsub.f32 %v483, %v606
        %608 = vmatpush.msra.mxu0 %v607
        %v609 = vand.u32 %v436, 4294901760
        %v610 = vsub.f32 %v436, %v609
        %611 = vmatpush.msra.mxu0 %v610
        %v612 = vand.u32 %v434, 4294901760
        %v613 = vsub.f32 %v434, %v612
        %614 = vmatpush.msra.mxu0 %v613
        %v615 = vand.u32 %v426, 4294901760
        %v616 = vsub.f32 %v426, %v615
        %617 = vmatpush.msra.mxu0 %v616
        %v618 = vand.u32 %v470, 4294901760
        %v619 = vsub.f32 %v470, %v618
        %620 = vmatmul.f32.gmra.mxu0 %v619
        %v621 = vpop.f32.mrf.mxu0
        %v622 = vadd.f32 %v580, %v621
        %v623 = vand.u32 %v473, 4294901760
        %v624 = vsub.f32 %v473, %v623
        %625 = vmatmul.f32.gmra.mxu0 %v624
        %v626 = vpop.f32.mrf.mxu0
        %v627 = vadd.f32 %v584, %v626
        %v628 = vand.u32 %v476, 4294901760
        %v629 = vsub.f32 %v476, %v628
        %630 = vmatmul.f32.gmra.mxu0 %v629
        %v631 = vpop.f32.mrf.mxu0
        %v632 = vadd.f32 %v588, %v631
        %v633 = vand.u32 %v479, 4294901760
        %v634 = vsub.f32 %v479, %v633
        %635 = vmatmul.f32.gmra.mxu0 %v634
        %v636 = vpop.f32.mrf.mxu0
        %v637 = vadd.f32 %v592, %v636
        %638 = vdwg.mxu0
        %639 = vmatpush.msra.mxu0 0.0
        %640 = vmatpush.msra.mxu0 0.0
        %641 = vmatpush.msra.mxu0 0.0
        %642 = vmatpush.msra.mxu0 0.0
        %643 = vmatpush.msra.mxu0 0.0
        %644 = vmatpush.msra.mxu0 0.0
        %645 = vmatpush.msra.mxu0 0.0
        %646 = vmatpush.msra.mxu0 0.0
        %647 = vmatpush.msra.mxu0 0.0
        %648 = vmatpush.msra.mxu0 0.0
        %649 = vmatpush.msra.mxu0 0.0
        %650 = vmatpush.msra.mxu0 0.0
        %v651 = vand.u32 %v483, 4294901760
        %652 = vmatpush.msra.mxu0 %v651
        %v653 = vand.u32 %v436, 4294901760
        %654 = vmatpush.msra.mxu0 %v653
        %v655 = vand.u32 %v434, 4294901760
        %656 = vmatpush.msra.mxu0 %v655
        %v657 = vand.u32 %v426, 4294901760
        %658 = vmatpush.msra.mxu0 %v657
        %v659 = vand.u32 %v470, 4294901760
        %v660 = vsub.f32 %v470, %v659
        %v661 = vand.u32 %v660, 4294901760
        %662 = vmatmul.f32.gmra.mxu0 %v661
        %v663 = vpop.f32.mrf.mxu0
        %v664 = vadd.f32 %v622, %v663
        %v665 = vand.u32 %v473, 4294901760
        %v666 = vsub.f32 %v473, %v665
        %v667 = vand.u32 %v666, 4294901760
        %668 = vmatmul.f32.gmra.mxu0 %v667
        %v669 = vpop.f32.mrf.mxu0
        %v670 = vadd.f32 %v627, %v669
        %v671 = vand.u32 %v476, 4294901760
        %v672 = vsub.f32 %v476, %v671
        %v673 = vand.u32 %v672, 4294901760
        %674 = vmatmul.f32.gmra.mxu0 %v673
        %v675 = vpop.f32.mrf.mxu0
        %v676 = vadd.f32 %v632, %v675
        %v677 = vand.u32 %v479, 4294901760
        %v678 = vsub.f32 %v479, %v677
        %v679 = vand.u32 %v678, 4294901760
        %680 = vmatmul.f32.gmra.mxu0 %v679
        %v681 = vpop.f32.mrf.mxu0
        %v682 = vadd.f32 %v637, %v681
        %683 = vdwg.mxu0
        %684 = vmatpush.msra.mxu0 0.0
        %685 = vmatpush.msra.mxu0 0.0
        %686 = vmatpush.msra.mxu0 0.0
        %687 = vmatpush.msra.mxu0 0.0
        %688 = vmatpush.msra.mxu0 0.0
        %689 = vmatpush.msra.mxu0 0.0
        %690 = vmatpush.msra.mxu0 0.0
        %691 = vmatpush.msra.mxu0 0.0
        %692 = vmatpush.msra.mxu0 0.0
        %693 = vmatpush.msra.mxu0 0.0
        %694 = vmatpush.msra.mxu0 0.0
        %695 = vmatpush.msra.mxu0 0.0
        %v696 = vand.u32 %v483, 4294901760
        %v697 = vsub.f32 %v483, %v696
        %v698 = vand.u32 %v697, 4294901760
        %699 = vmatpush.msra.mxu0 %v698
        %v700 = vand.u32 %v436, 4294901760
        %v701 = vsub.f32 %v436, %v700
        %v702 = vand.u32 %v701, 4294901760
        %703 = vmatpush.msra.mxu0 %v702
        %v704 = vand.u32 %v434, 4294901760
        %v705 = vsub.f32 %v434, %v704
        %v706 = vand.u32 %v705, 4294901760
        %707 = vmatpush.msra.mxu0 %v706
        %v708 = vand.u32 %v426, 4294901760
        %v709 = vsub.f32 %v426, %v708
        %v710 = vand.u32 %v709, 4294901760
        %711 = vmatpush.msra.mxu0 %v710
        %v712 = vand.u32 %v470, 4294901760
        %713 = vmatmul.f32.gmra.mxu0 %v712
        %v714 = vpop.f32.mrf.mxu0
        %v715 = vadd.f32 %v664, %v714
        %v716 = vand.u32 %v473, 4294901760
        %717 = vmatmul.f32.gmra.mxu0 %v716
        %v718 = vpop.f32.mrf.mxu0
        %v719 = vadd.f32 %v670, %v718
        %v720 = vand.u32 %v476, 4294901760
        %721 = vmatmul.f32.gmra.mxu0 %v720
        %v722 = vpop.f32.mrf.mxu0
        %v723 = vadd.f32 %v676, %v722
        %v724 = vand.u32 %v479, 4294901760
        %725 = vmatmul.f32.gmra.mxu0 %v724
        %v726 = vpop.f32.mrf.mxu0
        %v727 = vadd.f32 %v682, %v726
        %728 = vdwg.mxu0
        %729 = vmatpush.msra.mxu0 0.0
        %730 = vmatpush.msra.mxu0 0.0
        %731 = vmatpush.msra.mxu0 0.0
        %732 = vmatpush.msra.mxu0 0.0
        %733 = vmatpush.msra.mxu0 0.0
        %734 = vmatpush.msra.mxu0 0.0
        %735 = vmatpush.msra.mxu0 0.0
        %736 = vmatpush.msra.mxu0 0.0
        %737 = vmatpush.msra.mxu0 0.0
        %738 = vmatpush.msra.mxu0 0.0
        %739 = vmatpush.msra.mxu0 0.0
        %740 = vmatpush.msra.mxu0 0.0
        %v741 = vand.u32 %v483, 4294901760
        %742 = vmatpush.msra.mxu0 %v741
        %v743 = vand.u32 %v436, 4294901760
        %744 = vmatpush.msra.mxu0 %v743
        %v745 = vand.u32 %v434, 4294901760
        %746 = vmatpush.msra.mxu0 %v745
        %v747 = vand.u32 %v426, 4294901760
        %748 = vmatpush.msra.mxu0 %v747
        %v749 = vand.u32 %v470, 4294901760
        %750 = vmatmul.f32.gmra.mxu0 %v749
        %v751 = vpop.f32.mrf.mxu0
        %v752 = vadd.f32 %v715, %v751
        %v753 = vand.u32 %v473, 4294901760
        %754 = vmatmul.f32.gmra.mxu0 %v753
        %v755 = vpop.f32.mrf.mxu0
        %v756 = vadd.f32 %v719, %v755
        %v757 = vand.u32 %v476, 4294901760
        %758 = vmatmul.f32.gmra.mxu0 %v757
        %v759 = vpop.f32.mrf.mxu0
        %v760 = vadd.f32 %v723, %v759
        %v761 = vand.u32 %v479, 4294901760
        %762 = vmatmul.f32.gmra.mxu0 %v761
        %v763 = vpop.f32.mrf.mxu0
        %v764 = vadd.f32 %v727, %v763
        %765 = vdwg.mxu0
        %766 = vmatpush.msra.mxu0 0.0
        %767 = vmatpush.msra.mxu0 0.0
        %768 = vmatpush.msra.mxu0 0.0
        %769 = vmatpush.msra.mxu0 0.0
        %770 = vmatpush.msra.mxu0 0.0
        %771 = vmatpush.msra.mxu0 0.0
        %772 = vmatpush.msra.mxu0 0.0
        %773 = vmatpush.msra.mxu0 0.0
        %774 = vmatpush.msra.mxu0 0.0
        %775 = vmatpush.msra.mxu0 0.0
        %776 = vmatpush.msra.mxu0 0.0
        %777 = vmatpush.msra.mxu0 0.0
        %v778 = vand.u32 %v486, 4294901760
        %779 = vmatpush.msra.mxu0 %v778
        %v780 = vand.u32 %v437, 4294901760
        %781 = vmatpush.msra.mxu0 %v780
        %v782 = vand.u32 %v435, 4294901760
        %783 = vmatpush.msra.mxu0 %v782
        %v784 = vand.u32 %v427, 4294901760
        %785 = vmatpush.msra.mxu0 %v784
        %v786 = vand.u32 %v470, 4294901760
        %v787 = vsub.f32 %v470, %v786
        %v788 = vand.u32 %v787, 4294901760
        %v789 = vsub.f32 %v787, %v788
        %v790 = vand.u32 %v789, 4294901760
        %791 = vmatmul.f32.gmra.mxu0 %v790
        %v792 = vpop.f32.mrf.mxu0
        %v793 = vadd.f32 %v451, %v792
        %v794 = vand.u32 %v473, 4294901760
        %v795 = vsub.f32 %v473, %v794
        %v796 = vand.u32 %v795, 4294901760
        %v797 = vsub.f32 %v795, %v796
        %v798 = vand.u32 %v797, 4294901760
        %799 = vmatmul.f32.gmra.mxu0 %v798
        %v800 = vpop.f32.mrf.mxu0
        %v801 = vadd.f32 %v456, %v800
        %v802 = vand.u32 %v476, 4294901760
        %v803 = vsub.f32 %v476, %v802
        %v804 = vand.u32 %v803, 4294901760
        %v805 = vsub.f32 %v803, %v804
        %v806 = vand.u32 %v805, 4294901760
        %807 = vmatmul.f32.gmra.mxu0 %v806
        %v808 = vpop.f32.mrf.mxu0
        %v809 = vadd.f32 %v461, %v808
        %v810 = vand.u32 %v479, 4294901760
        %v811 = vsub.f32 %v479, %v810
        %v812 = vand.u32 %v811, 4294901760
        %v813 = vsub.f32 %v811, %v812
        %v814 = vand.u32 %v813, 4294901760
        %815 = vmatmul.f32.gmra.mxu0 %v814
        %v816 = vpop.f32.mrf.mxu0
        %v817 = vadd.f32 %v466, %v816
        %818 = vdwg.mxu0
        %819 = vmatpush.msra.mxu0 0.0
        %820 = vmatpush.msra.mxu0 0.0
        %821 = vmatpush.msra.mxu0 0.0
        %822 = vmatpush.msra.mxu0 0.0
        %823 = vmatpush.msra.mxu0 0.0
        %824 = vmatpush.msra.mxu0 0.0
        %825 = vmatpush.msra.mxu0 0.0
        %826 = vmatpush.msra.mxu0 0.0
        %827 = vmatpush.msra.mxu0 0.0
        %828 = vmatpush.msra.mxu0 0.0
        %829 = vmatpush.msra.mxu0 0.0
        %830 = vmatpush.msra.mxu0 0.0
        %v831 = vand.u32 %v486, 4294901760
        %v832 = vsub.f32 %v486, %v831
        %v833 = vand.u32 %v832, 4294901760
        %v834 = vsub.f32 %v832, %v833
        %v835 = vand.u32 %v834, 4294901760
        %836 = vmatpush.msra.mxu0 %v835
        %v837 = vand.u32 %v437, 4294901760
        %v838 = vsub.f32 %v437, %v837
        %v839 = vand.u32 %v838, 4294901760
        %v840 = vsub.f32 %v838, %v839
        %v841 = vand.u32 %v840, 4294901760
        %842 = vmatpush.msra.mxu0 %v841
        %v843 = vand.u32 %v435, 4294901760
        %v844 = vsub.f32 %v435, %v843
        %v845 = vand.u32 %v844, 4294901760
        %v846 = vsub.f32 %v844, %v845
        %v847 = vand.u32 %v846, 4294901760
        %848 = vmatpush.msra.mxu0 %v847
        %v849 = vand.u32 %v427, 4294901760
        %v850 = vsub.f32 %v427, %v849
        %v851 = vand.u32 %v850, 4294901760
        %v852 = vsub.f32 %v850, %v851
        %v853 = vand.u32 %v852, 4294901760
        %854 = vmatpush.msra.mxu0 %v853
        %v855 = vand.u32 %v470, 4294901760
        %856 = vmatmul.f32.gmra.mxu0 %v855
        %v857 = vpop.f32.mrf.mxu0
        %v858 = vadd.f32 %v793, %v857
        %v859 = vand.u32 %v473, 4294901760
        %860 = vmatmul.f32.gmra.mxu0 %v859
        %v861 = vpop.f32.mrf.mxu0
        %v862 = vadd.f32 %v801, %v861
        %v863 = vand.u32 %v476, 4294901760
        %864 = vmatmul.f32.gmra.mxu0 %v863
        %v865 = vpop.f32.mrf.mxu0
        %v866 = vadd.f32 %v809, %v865
        %v867 = vand.u32 %v479, 4294901760
        %868 = vmatmul.f32.gmra.mxu0 %v867
        %v869 = vpop.f32.mrf.mxu0
        %v870 = vadd.f32 %v817, %v869
        %871 = vdwg.mxu0
        %872 = vmatpush.msra.mxu0 0.0
        %873 = vmatpush.msra.mxu0 0.0
        %874 = vmatpush.msra.mxu0 0.0
        %875 = vmatpush.msra.mxu0 0.0
        %876 = vmatpush.msra.mxu0 0.0
        %877 = vmatpush.msra.mxu0 0.0
        %878 = vmatpush.msra.mxu0 0.0
        %879 = vmatpush.msra.mxu0 0.0
        %880 = vmatpush.msra.mxu0 0.0
        %881 = vmatpush.msra.mxu0 0.0
        %882 = vmatpush.msra.mxu0 0.0
        %883 = vmatpush.msra.mxu0 0.0
        %v884 = vand.u32 %v486, 4294901760
        %v885 = vsub.f32 %v486, %v884
        %886 = vmatpush.msra.mxu0 %v885
        %v887 = vand.u32 %v437, 4294901760
        %v888 = vsub.f32 %v437, %v887
        %889 = vmatpush.msra.mxu0 %v888
        %v890 = vand.u32 %v435, 4294901760
        %v891 = vsub.f32 %v435, %v890
        %892 = vmatpush.msra.mxu0 %v891
        %v893 = vand.u32 %v427, 4294901760
        %v894 = vsub.f32 %v427, %v893
        %895 = vmatpush.msra.mxu0 %v894
        %v896 = vand.u32 %v470, 4294901760
        %v897 = vsub.f32 %v470, %v896
        %898 = vmatmul.f32.gmra.mxu0 %v897
        %v899 = vpop.f32.mrf.mxu0
        %v900 = vadd.f32 %v858, %v899
        %v901 = vand.u32 %v473, 4294901760
        %v902 = vsub.f32 %v473, %v901
        %903 = vmatmul.f32.gmra.mxu0 %v902
        %v904 = vpop.f32.mrf.mxu0
        %v905 = vadd.f32 %v862, %v904
        %v906 = vand.u32 %v476, 4294901760
        %v907 = vsub.f32 %v476, %v906
        %908 = vmatmul.f32.gmra.mxu0 %v907
        %v909 = vpop.f32.mrf.mxu0
        %v910 = vadd.f32 %v866, %v909
        %v911 = vand.u32 %v479, 4294901760
        %v912 = vsub.f32 %v479, %v911
        %913 = vmatmul.f32.gmra.mxu0 %v912
        %v914 = vpop.f32.mrf.mxu0
        %v915 = vadd.f32 %v870, %v914
        %916 = vdwg.mxu0
        %917 = vmatpush.msra.mxu0 0.0
        %918 = vmatpush.msra.mxu0 0.0
        %919 = vmatpush.msra.mxu0 0.0
        %920 = vmatpush.msra.mxu0 0.0
        %921 = vmatpush.msra.mxu0 0.0
        %922 = vmatpush.msra.mxu0 0.0
        %923 = vmatpush.msra.mxu0 0.0
        %924 = vmatpush.msra.mxu0 0.0
        %925 = vmatpush.msra.mxu0 0.0
        %926 = vmatpush.msra.mxu0 0.0
        %927 = vmatpush.msra.mxu0 0.0
        %928 = vmatpush.msra.mxu0 0.0
        %v929 = vand.u32 %v486, 4294901760
        %930 = vmatpush.msra.mxu0 %v929
        %v931 = vand.u32 %v437, 4294901760
        %932 = vmatpush.msra.mxu0 %v931
        %v933 = vand.u32 %v435, 4294901760
        %934 = vmatpush.msra.mxu0 %v933
        %v935 = vand.u32 %v427, 4294901760
        %936 = vmatpush.msra.mxu0 %v935
        %v937 = vand.u32 %v470, 4294901760
        %v938 = vsub.f32 %v470, %v937
        %v939 = vand.u32 %v938, 4294901760
        %940 = vmatmul.f32.gmra.mxu0 %v939
        %v941 = vpop.f32.mrf.mxu0
        %v942 = vadd.f32 %v900, %v941
        %v943 = vand.u32 %v473, 4294901760
        %v944 = vsub.f32 %v473, %v943
        %v945 = vand.u32 %v944, 4294901760
        %946 = vmatmul.f32.gmra.mxu0 %v945
        %v947 = vpop.f32.mrf.mxu0
        %v948 = vadd.f32 %v905, %v947
        %v949 = vand.u32 %v476, 4294901760
        %v950 = vsub.f32 %v476, %v949
        %v951 = vand.u32 %v950, 4294901760
        %952 = vmatmul.f32.gmra.mxu0 %v951
        %v953 = vpop.f32.mrf.mxu0
        %v954 = vadd.f32 %v910, %v953
        %v955 = vand.u32 %v479, 4294901760
        %v956 = vsub.f32 %v479, %v955
        %v957 = vand.u32 %v956, 4294901760
        %958 = vmatmul.f32.gmra.mxu0 %v957
        %v959 = vpop.f32.mrf.mxu0
        %v960 = vadd.f32 %v915, %v959
        %961 = vdwg.mxu0
        %962 = vmatpush.msra.mxu0 0.0
        %963 = vmatpush.msra.mxu0 0.0
        %964 = vmatpush.msra.mxu0 0.0
        %965 = vmatpush.msra.mxu0 0.0
        %966 = vmatpush.msra.mxu0 0.0
        %967 = vmatpush.msra.mxu0 0.0
        %968 = vmatpush.msra.mxu0 0.0
        %969 = vmatpush.msra.mxu0 0.0
        %970 = vmatpush.msra.mxu0 0.0
        %971 = vmatpush.msra.mxu0 0.0
        %972 = vmatpush.msra.mxu0 0.0
        %973 = vmatpush.msra.mxu0 0.0
        %v974 = vand.u32 %v486, 4294901760
        %v975 = vsub.f32 %v486, %v974
        %v976 = vand.u32 %v975, 4294901760
        %977 = vmatpush.msra.mxu0 %v976
        %v978 = vand.u32 %v437, 4294901760
        %v979 = vsub.f32 %v437, %v978
        %v980 = vand.u32 %v979, 4294901760
        %981 = vmatpush.msra.mxu0 %v980
        %v982 = vand.u32 %v435, 4294901760
        %v983 = vsub.f32 %v435, %v982
        %v984 = vand.u32 %v983, 4294901760
        %985 = vmatpush.msra.mxu0 %v984
        %v986 = vand.u32 %v427, 4294901760
        %v987 = vsub.f32 %v427, %v986
        %v988 = vand.u32 %v987, 4294901760
        %989 = vmatpush.msra.mxu0 %v988
        %v990 = vand.u32 %v470, 4294901760
        %991 = vmatmul.f32.gmra.mxu0 %v990
        %v992 = vpop.f32.mrf.mxu0
        %v993 = vadd.f32 %v942, %v992
        %v994 = vand.u32 %v473, 4294901760
        %995 = vmatmul.f32.gmra.mxu0 %v994
        %v996 = vpop.f32.mrf.mxu0
        %v997 = vadd.f32 %v948, %v996
        %v998 = vand.u32 %v476, 4294901760
        %999 = vmatmul.f32.gmra.mxu0 %v998
        %v1000 = vpop.f32.mrf.mxu0
        %v1001 = vadd.f32 %v954, %v1000
        %v1002 = vand.u32 %v479, 4294901760
        %1003 = vmatmul.f32.gmra.mxu0 %v1002
        %v1004 = vpop.f32.mrf.mxu0
        %v1005 = vadd.f32 %v960, %v1004
        %1006 = vdwg.mxu0
        %1007 = vmatpush.msra.mxu0 0.0
        %1008 = vmatpush.msra.mxu0 0.0
        %1009 = vmatpush.msra.mxu0 0.0
        %1010 = vmatpush.msra.mxu0 0.0
        %1011 = vmatpush.msra.mxu0 0.0
        %1012 = vmatpush.msra.mxu0 0.0
        %1013 = vmatpush.msra.mxu0 0.0
        %1014 = vmatpush.msra.mxu0 0.0
        %1015 = vmatpush.msra.mxu0 0.0
        %1016 = vmatpush.msra.mxu0 0.0
        %1017 = vmatpush.msra.mxu0 0.0
        %1018 = vmatpush.msra.mxu0 0.0
        %v1019 = vand.u32 %v486, 4294901760
        %1020 = vmatpush.msra.mxu0 %v1019
        %v1021 = vand.u32 %v437, 4294901760
        %1022 = vmatpush.msra.mxu0 %v1021
        %v1023 = vand.u32 %v435, 4294901760
        %1024 = vmatpush.msra.mxu0 %v1023
        %v1025 = vand.u32 %v427, 4294901760
        %1026 = vmatpush.msra.mxu0 %v1025
        %v1027 = vand.u32 %v470, 4294901760
        %1028 = vmatmul.f32.gmra.mxu0 %v1027
        %v1029 = vpop.f32.mrf.mxu0
        %v1030 = vadd.f32 %v993, %v1029
        %v1031 = vand.u32 %v473, 4294901760
        %1032 = vmatmul.f32.gmra.mxu0 %v1031
        %v1033 = vpop.f32.mrf.mxu0
        %v1034 = vadd.f32 %v997, %v1033
        %v1035 = vand.u32 %v476, 4294901760
        %1036 = vmatmul.f32.gmra.mxu0 %v1035
        %v1037 = vpop.f32.mrf.mxu0
        %v1038 = vadd.f32 %v1001, %v1037
        %v1039 = vand.u32 %v479, 4294901760
        %1040 = vmatmul.f32.gmra.mxu0 %v1039
        %v1041 = vpop.f32.mrf.mxu0
        %v1042 = vadd.f32 %v1005, %v1041
        %1043 = vdwg.mxu0
        %v1044 = vtanh.pop %v752
        %v1045 = vtanh.pop %v1030
        %v1046 = vtanh.pop %v756
        %v1047 = vtanh.pop %v1034
        %v1048 = vtanh.pop %v760
        %v1049 = vtanh.pop %v1038
        %v1050 = vtanh.pop %v764
        %v1051 = vtanh.pop %v1042
        %v1052 = vld [vmem:[#allocation6] sm:$0xff]
        %v1053 = vld [vmem:[#allocation6 + $0x8] sm:$0xff]
        %v1054 = vld [vmem:[%s5] sm:$0xff]
        %v1055 = vld [vmem:[%s5 + $0x8] sm:$0xff]
        %1057 = vset.pattern.permute.xlu0 0
        %1058 = vperm.xlu0 %1057, %v1054
        %v1059 = vpop.permute.xlu0 %1058
        %1062 = vset.pattern.permute.xlu0 0
        %1063 = vperm.xlu0 %1062, %v1055
        %v1064 = vpop.permute.xlu0 %1063
        %vm1066 = vcmask 261120
        %v1068 = vsel %vm1066, %v1052, 0
        %v1071 = vsel %vm1066, %v1053, 0
        %1073 = vmatpush.msra.mxu0 0.0
        %1074 = vmatpush.msra.mxu0 0.0
        %1075 = vmatpush.msra.mxu0 0.0
        %1076 = vmatpush.msra.mxu0 0.0
        %1077 = vmatpush.msra.mxu0 0.0
        %1078 = vmatpush.msra.mxu0 0.0
        %1079 = vmatpush.msra.mxu0 0.0
        %1080 = vmatpush.msra.mxu0 0.0
        %1081 = vmatpush.msra.mxu0 0.0
        %1082 = vmatpush.msra.mxu0 0.0
        %1083 = vmatpush.msra.mxu0 0.0
        %1084 = vmatpush.msra.mxu0 0.0
        %v1085 = vand.u32 %v1050, 4294901760
        %1086 = vmatpush.msra.mxu0 %v1085
        %v1087 = vand.u32 %v1048, 4294901760
        %1088 = vmatpush.msra.mxu0 %v1087
        %v1089 = vand.u32 %v1046, 4294901760
        %1090 = vmatpush.msra.mxu0 %v1089
        %v1091 = vand.u32 %v1044, 4294901760
        %1092 = vmatpush.msra.mxu0 %v1091
        %v1093 = vand.u32 %v1068, 4294901760
        %v1094 = vsub.f32 %v1068, %v1093
        %v1095 = vand.u32 %v1094, 4294901760
        %v1096 = vsub.f32 %v1094, %v1095
        %v1097 = vand.u32 %v1096, 4294901760
        %1098 = vmatmul.f32.gmra.mxu0 %v1097
        %v1099 = vpop.f32.mrf.mxu0
        %v1100 = vadd.f32 %v1059, %v1099
        %v1101 = vand.u32 %v1071, 4294901760
        %v1102 = vsub.f32 %v1071, %v1101
        %v1103 = vand.u32 %v1102, 4294901760
        %v1104 = vsub.f32 %v1102, %v1103
        %v1105 = vand.u32 %v1104, 4294901760
        %1106 = vmatmul.f32.gmra.mxu0 %v1105
        %v1107 = vpop.f32.mrf.mxu0
        %v1108 = vadd.f32 %v1064, %v1107
        %1109 = vdwg.mxu0
        %1110 = vmatpush.msra.mxu0 0.0
        %1111 = vmatpush.msra.mxu0 0.0
        %1112 = vmatpush.msra.mxu0 0.0
        %1113 = vmatpush.msra.mxu0 0.0
        %1114 = vmatpush.msra.mxu0 0.0
        %1115 = vmatpush.msra.mxu0 0.0
        %1116 = vmatpush.msra.mxu0 0.0
        %1117 = vmatpush.msra.mxu0 0.0
        %1118 = vmatpush.msra.mxu0 0.0
        %1119 = vmatpush.msra.mxu0 0.0
        %1120 = vmatpush.msra.mxu0 0.0
        %1121 = vmatpush.msra.mxu0 0.0
        %v1122 = vand.u32 %v1050, 4294901760
        %v1123 = vsub.f32 %v1050, %v1122
        %v1124 = vand.u32 %v1123, 4294901760
        %v1125 = vsub.f32 %v1123, %v1124
        %v1126 = vand.u32 %v1125, 4294901760
        %1127 = vmatpush.msra.mxu0 %v1126
        %v1128 = vand.u32 %v1048, 4294901760
        %v1129 = vsub.f32 %v1048, %v1128
        %v1130 = vand.u32 %v1129, 4294901760
        %v1131 = vsub.f32 %v1129, %v1130
        %v1132 = vand.u32 %v1131, 4294901760
        %1133 = vmatpush.msra.mxu0 %v1132
        %v1134 = vand.u32 %v1046, 4294901760
        %v1135 = vsub.f32 %v1046, %v1134
        %v1136 = vand.u32 %v1135, 4294901760
        %v1137 = vsub.f32 %v1135, %v1136
        %v1138 = vand.u32 %v1137, 4294901760
        %1139 = vmatpush.msra.mxu0 %v1138
        %v1140 = vand.u32 %v1044, 4294901760
        %v1141 = vsub.f32 %v1044, %v1140
        %v1142 = vand.u32 %v1141, 4294901760
        %v1143 = vsub.f32 %v1141, %v1142
        %v1144 = vand.u32 %v1143, 4294901760
        %1145 = vmatpush.msra.mxu0 %v1144
        %v1146 = vand.u32 %v1068, 4294901760
        %1147 = vmatmul.f32.gmra.mxu0 %v1146
        %v1148 = vpop.f32.mrf.mxu0
        %v1149 = vadd.f32 %v1100, %v1148
        %v1150 = vand.u32 %v1071, 4294901760
        %1151 = vmatmul.f32.gmra.mxu0 %v1150
        %v1152 = vpop.f32.mrf.mxu0
        %v1153 = vadd.f32 %v1108, %v1152
        %1154 = vdwg.mxu0
        %1155 = vmatpush.msra.mxu0 0.0
        %1156 = vmatpush.msra.mxu0 0.0
        %1157 = vmatpush.msra.mxu0 0.0
        %1158 = vmatpush.msra.mxu0 0.0
        %1159 = vmatpush.msra.mxu0 0.0
        %1160 = vmatpush.msra.mxu0 0.0
        %1161 = vmatpush.msra.mxu0 0.0
        %1162 = vmatpush.msra.mxu0 0.0
        %1163 = vmatpush.msra.mxu0 0.0
        %1164 = vmatpush.msra.mxu0 0.0
        %1165 = vmatpush.msra.mxu0 0.0
        %1166 = vmatpush.msra.mxu0 0.0
        %v1167 = vand.u32 %v1050, 4294901760
        %v1168 = vsub.f32 %v1050, %v1167
        %1169 = vmatpush.msra.mxu0 %v1168
        %v1170 = vand.u32 %v1048, 4294901760
        %v1171 = vsub.f32 %v1048, %v1170
        %1172 = vmatpush.msra.mxu0 %v1171
        %v1173 = vand.u32 %v1046, 4294901760
        %v1174 = vsub.f32 %v1046, %v1173
        %1175 = vmatpush.msra.mxu0 %v1174
        %v1176 = vand.u32 %v1044, 4294901760
        %v1177 = vsub.f32 %v1044, %v1176
        %1178 = vmatpush.msra.mxu0 %v1177
        %v1179 = vand.u32 %v1068, 4294901760
        %v1180 = vsub.f32 %v1068, %v1179
        %1181 = vmatmul.f32.gmra.mxu0 %v1180
        %v1182 = vpop.f32.mrf.mxu0
        %v1183 = vadd.f32 %v1149, %v1182
        %v1184 = vand.u32 %v1071, 4294901760
        %v1185 = vsub.f32 %v1071, %v1184
        %1186 = vmatmul.f32.gmra.mxu0 %v1185
        %v1187 = vpop.f32.mrf.mxu0
        %v1188 = vadd.f32 %v1153, %v1187
        %1189 = vdwg.mxu0
        %1190 = vmatpush.msra.mxu0 0.0
        %1191 = vmatpush.msra.mxu0 0.0
        %1192 = vmatpush.msra.mxu0 0.0
        %1193 = vmatpush.msra.mxu0 0.0
        %1194 = vmatpush.msra.mxu0 0.0
        %1195 = vmatpush.msra.mxu0 0.0
        %1196 = vmatpush.msra.mxu0 0.0
        %1197 = vmatpush.msra.mxu0 0.0
        %1198 = vmatpush.msra.mxu0 0.0
        %1199 = vmatpush.msra.mxu0 0.0
        %1200 = vmatpush.msra.mxu0 0.0
        %1201 = vmatpush.msra.mxu0 0.0
        %v1202 = vand.u32 %v1050, 4294901760
        %1203 = vmatpush.msra.mxu0 %v1202
        %v1204 = vand.u32 %v1048, 4294901760
        %1205 = vmatpush.msra.mxu0 %v1204
        %v1206 = vand.u32 %v1046, 4294901760
        %1207 = vmatpush.msra.mxu0 %v1206
        %v1208 = vand.u32 %v1044, 4294901760
        %1209 = vmatpush.msra.mxu0 %v1208
        %v1210 = vand.u32 %v1068, 4294901760
        %v1211 = vsub.f32 %v1068, %v1210
        %v1212 = vand.u32 %v1211, 4294901760
        %1213 = vmatmul.f32.gmra.mxu0 %v1212
        %v1214 = vpop.f32.mrf.mxu0
        %v1215 = vadd.f32 %v1183, %v1214
        %v1216 = vand.u32 %v1071, 4294901760
        %v1217 = vsub.f32 %v1071, %v1216
        %v1218 = vand.u32 %v1217, 4294901760
        %1219 = vmatmul.f32.gmra.mxu0 %v1218
        %v1220 = vpop.f32.mrf.mxu0
        %v1221 = vadd.f32 %v1188, %v1220
        %1222 = vdwg.mxu0
        %1223 = vmatpush.msra.mxu0 0.0
        %1224 = vmatpush.msra.mxu0 0.0
        %1225 = vmatpush.msra.mxu0 0.0
        %1226 = vmatpush.msra.mxu0 0.0
        %1227 = vmatpush.msra.mxu0 0.0
        %1228 = vmatpush.msra.mxu0 0.0
        %1229 = vmatpush.msra.mxu0 0.0
        %1230 = vmatpush.msra.mxu0 0.0
        %1231 = vmatpush.msra.mxu0 0.0
        %1232 = vmatpush.msra.mxu0 0.0
        %1233 = vmatpush.msra.mxu0 0.0
        %1234 = vmatpush.msra.mxu0 0.0
        %v1235 = vand.u32 %v1050, 4294901760
        %v1236 = vsub.f32 %v1050, %v1235
        %v1237 = vand.u32 %v1236, 4294901760
        %1238 = vmatpush.msra.mxu0 %v1237
        %v1239 = vand.u32 %v1048, 4294901760
        %v1240 = vsub.f32 %v1048, %v1239
        %v1241 = vand.u32 %v1240, 4294901760
        %1242 = vmatpush.msra.mxu0 %v1241
        %v1243 = vand.u32 %v1046, 4294901760
        %v1244 = vsub.f32 %v1046, %v1243
        %v1245 = vand.u32 %v1244, 4294901760
        %1246 = vmatpush.msra.mxu0 %v1245
        %v1247 = vand.u32 %v1044, 4294901760
        %v1248 = vsub.f32 %v1044, %v1247
        %v1249 = vand.u32 %v1248, 4294901760
        %1250 = vmatpush.msra.mxu0 %v1249
        %v1251 = vand.u32 %v1068, 4294901760
        %1252 = vmatmul.f32.gmra.mxu0 %v1251
        %v1253 = vpop.f32.mrf.mxu0
        %v1254 = vadd.f32 %v1215, %v1253
        %v1255 = vand.u32 %v1071, 4294901760
        %1256 = vmatmul.f32.gmra.mxu0 %v1255
        %v1257 = vpop.f32.mrf.mxu0
        %v1258 = vadd.f32 %v1221, %v1257
        %1259 = vdwg.mxu0
        %1260 = vmatpush.msra.mxu0 0.0
        %1261 = vmatpush.msra.mxu0 0.0
        %1262 = vmatpush.msra.mxu0 0.0
        %1263 = vmatpush.msra.mxu0 0.0
        %1264 = vmatpush.msra.mxu0 0.0
        %1265 = vmatpush.msra.mxu0 0.0
        %1266 = vmatpush.msra.mxu0 0.0
        %1267 = vmatpush.msra.mxu0 0.0
        %1268 = vmatpush.msra.mxu0 0.0
        %1269 = vmatpush.msra.mxu0 0.0
        %1270 = vmatpush.msra.mxu0 0.0
        %1271 = vmatpush.msra.mxu0 0.0
        %v1272 = vand.u32 %v1050, 4294901760
        %1273 = vmatpush.msra.mxu0 %v1272
        %v1274 = vand.u32 %v1048, 4294901760
        %1275 = vmatpush.msra.mxu0 %v1274
        %v1276 = vand.u32 %v1046, 4294901760
        %1277 = vmatpush.msra.mxu0 %v1276
        %v1278 = vand.u32 %v1044, 4294901760
        %1279 = vmatpush.msra.mxu0 %v1278
        %v1280 = vand.u32 %v1068, 4294901760
        %1281 = vmatmul.f32.gmra.mxu0 %v1280
        %v1282 = vpop.f32.mrf.mxu0
        %v1283 = vadd.f32 %v1254, %v1282
        %v1284 = vand.u32 %v1071, 4294901760
        %1285 = vmatmul.f32.gmra.mxu0 %v1284
        %v1286 = vpop.f32.mrf.mxu0
        %v1287 = vadd.f32 %v1258, %v1286
        %1288 = vdwg.mxu0
        %1289 = vmatpush.msra.mxu0 0.0
        %1290 = vmatpush.msra.mxu0 0.0
        %1291 = vmatpush.msra.mxu0 0.0
        %1292 = vmatpush.msra.mxu0 0.0
        %1293 = vmatpush.msra.mxu0 0.0
        %1294 = vmatpush.msra.mxu0 0.0
        %1295 = vmatpush.msra.mxu0 0.0
        %1296 = vmatpush.msra.mxu0 0.0
        %1297 = vmatpush.msra.mxu0 0.0
        %1298 = vmatpush.msra.mxu0 0.0
        %1299 = vmatpush.msra.mxu0 0.0
        %1300 = vmatpush.msra.mxu0 0.0
        %v1301 = vand.u32 %v1051, 4294901760
        %1302 = vmatpush.msra.mxu0 %v1301
        %v1303 = vand.u32 %v1049, 4294901760
        %1304 = vmatpush.msra.mxu0 %v1303
        %v1305 = vand.u32 %v1047, 4294901760
        %1306 = vmatpush.msra.mxu0 %v1305
        %v1307 = vand.u32 %v1045, 4294901760
        %1308 = vmatpush.msra.mxu0 %v1307
        %v1309 = vand.u32 %v1068, 4294901760
        %v1310 = vsub.f32 %v1068, %v1309
        %v1311 = vand.u32 %v1310, 4294901760
        %v1312 = vsub.f32 %v1310, %v1311
        %v1313 = vand.u32 %v1312, 4294901760
        %1314 = vmatmul.f32.gmra.mxu0 %v1313
        %v1315 = vpop.f32.mrf.mxu0
        %v1316 = vadd.f32 %v1059, %v1315
        %v1317 = vand.u32 %v1071, 4294901760
        %v1318 = vsub.f32 %v1071, %v1317
        %v1319 = vand.u32 %v1318, 4294901760
        %v1320 = vsub.f32 %v1318, %v1319
        %v1321 = vand.u32 %v1320, 4294901760
        %1322 = vmatmul.f32.gmra.mxu0 %v1321
        %v1323 = vpop.f32.mrf.mxu0
        %v1324 = vadd.f32 %v1064, %v1323
        %1325 = vdwg.mxu0
        %1326 = vmatpush.msra.mxu0 0.0
        %1327 = vmatpush.msra.mxu0 0.0
        %1328 = vmatpush.msra.mxu0 0.0
        %1329 = vmatpush.msra.mxu0 0.0
        %1330 = vmatpush.msra.mxu0 0.0
        %1331 = vmatpush.msra.mxu0 0.0
        %1332 = vmatpush.msra.mxu0 0.0
        %1333 = vmatpush.msra.mxu0 0.0
        %1334 = vmatpush.msra.mxu0 0.0
        %1335 = vmatpush.msra.mxu0 0.0
        %1336 = vmatpush.msra.mxu0 0.0
        %1337 = vmatpush.msra.mxu0 0.0
        %v1338 = vand.u32 %v1051, 4294901760
        %v1339 = vsub.f32 %v1051, %v1338
        %v1340 = vand.u32 %v1339, 4294901760
        %v1341 = vsub.f32 %v1339, %v1340
        %v1342 = vand.u32 %v1341, 4294901760
        %1343 = vmatpush.msra.mxu0 %v1342
        %v1344 = vand.u32 %v1049, 4294901760
        %v1345 = vsub.f32 %v1049, %v1344
        %v1346 = vand.u32 %v1345, 4294901760
        %v1347 = vsub.f32 %v1345, %v1346
        %v1348 = vand.u32 %v1347, 4294901760
        %1349 = vmatpush.msra.mxu0 %v1348
        %v1350 = vand.u32 %v1047, 4294901760
        %v1351 = vsub.f32 %v1047, %v1350
        %v1352 = vand.u32 %v1351, 4294901760
        %v1353 = vsub.f32 %v1351, %v1352
        %v1354 = vand.u32 %v1353, 4294901760
        %1355 = vmatpush.msra.mxu0 %v1354
        %v1356 = vand.u32 %v1045, 4294901760
        %v1357 = vsub.f32 %v1045, %v1356
        %v1358 = vand.u32 %v1357, 4294901760
        %v1359 = vsub.f32 %v1357, %v1358
        %v1360 = vand.u32 %v1359, 4294901760
        %1361 = vmatpush.msra.mxu0 %v1360
        %v1362 = vand.u32 %v1068, 4294901760
        %1363 = vmatmul.f32.gmra.mxu0 %v1362
        %v1364 = vpop.f32.mrf.mxu0
        %v1365 = vadd.f32 %v1316, %v1364
        %v1366 = vand.u32 %v1071, 4294901760
        %1367 = vmatmul.f32.gmra.mxu0 %v1366
        %v1368 = vpop.f32.mrf.mxu0
        %v1369 = vadd.f32 %v1324, %v1368
        %1370 = vdwg.mxu0
        %1371 = vmatpush.msra.mxu0 0.0
        %1372 = vmatpush.msra.mxu0 0.0
        %1373 = vmatpush.msra.mxu0 0.0
        %1374 = vmatpush.msra.mxu0 0.0
        %1375 = vmatpush.msra.mxu0 0.0
        %1376 = vmatpush.msra.mxu0 0.0
        %1377 = vmatpush.msra.mxu0 0.0
        %1378 = vmatpush.msra.mxu0 0.0
        %1379 = vmatpush.msra.mxu0 0.0
        %1380 = vmatpush.msra.mxu0 0.0
        %1381 = vmatpush.msra.mxu0 0.0
        %1382 = vmatpush.msra.mxu0 0.0
        %v1383 = vand.u32 %v1051, 4294901760
        %v1384 = vsub.f32 %v1051, %v1383
        %1385 = vmatpush.msra.mxu0 %v1384
        %v1386 = vand.u32 %v1049, 4294901760
        %v1387 = vsub.f32 %v1049, %v1386
        %1388 = vmatpush.msra.mxu0 %v1387
        %v1389 = vand.u32 %v1047, 4294901760
        %v1390 = vsub.f32 %v1047, %v1389
        %1391 = vmatpush.msra.mxu0 %v1390
        %v1392 = vand.u32 %v1045, 4294901760
        %v1393 = vsub.f32 %v1045, %v1392
        %1394 = vmatpush.msra.mxu0 %v1393
        %v1395 = vand.u32 %v1068, 4294901760
        %v1396 = vsub.f32 %v1068, %v1395
        %1397 = vmatmul.f32.gmra.mxu0 %v1396
        %v1398 = vpop.f32.mrf.mxu0
        %v1399 = vadd.f32 %v1365, %v1398
        %v1400 = vand.u32 %v1071, 4294901760
        %v1401 = vsub.f32 %v1071, %v1400
        %1402 = vmatmul.f32.gmra.mxu0 %v1401
        %v1403 = vpop.f32.mrf.mxu0
        %v1404 = vadd.f32 %v1369, %v1403
        %1405 = vdwg.mxu0
        %1406 = vmatpush.msra.mxu0 0.0
        %1407 = vmatpush.msra.mxu0 0.0
        %1408 = vmatpush.msra.mxu0 0.0
        %1409 = vmatpush.msra.mxu0 0.0
        %1410 = vmatpush.msra.mxu0 0.0
        %1411 = vmatpush.msra.mxu0 0.0
        %1412 = vmatpush.msra.mxu0 0.0
        %1413 = vmatpush.msra.mxu0 0.0
        %1414 = vmatpush.msra.mxu0 0.0
        %1415 = vmatpush.msra.mxu0 0.0
        %1416 = vmatpush.msra.mxu0 0.0
        %1417 = vmatpush.msra.mxu0 0.0
        %v1418 = vand.u32 %v1051, 4294901760
        %1419 = vmatpush.msra.mxu0 %v1418
        %v1420 = vand.u32 %v1049, 4294901760
        %1421 = vmatpush.msra.mxu0 %v1420
        %v1422 = vand.u32 %v1047, 4294901760
        %1423 = vmatpush.msra.mxu0 %v1422
        %v1424 = vand.u32 %v1045, 4294901760
        %1425 = vmatpush.msra.mxu0 %v1424
        %v1426 = vand.u32 %v1068, 4294901760
        %v1427 = vsub.f32 %v1068, %v1426
        %v1428 = vand.u32 %v1427, 4294901760
        %1429 = vmatmul.f32.gmra.mxu0 %v1428
        %v1430 = vpop.f32.mrf.mxu0
        %v1431 = vadd.f32 %v1399, %v1430
        %v1432 = vand.u32 %v1071, 4294901760
        %v1433 = vsub.f32 %v1071, %v1432
        %v1434 = vand.u32 %v1433, 4294901760
        %1435 = vmatmul.f32.gmra.mxu0 %v1434
        %v1436 = vpop.f32.mrf.mxu0
        %v1437 = vadd.f32 %v1404, %v1436
        %1438 = vdwg.mxu0
        %1439 = vmatpush.msra.mxu0 0.0
        %1440 = vmatpush.msra.mxu0 0.0
        %1441 = vmatpush.msra.mxu0 0.0
        %1442 = vmatpush.msra.mxu0 0.0
        %1443 = vmatpush.msra.mxu0 0.0
        %1444 = vmatpush.msra.mxu0 0.0
        %1445 = vmatpush.msra.mxu0 0.0
        %1446 = vmatpush.msra.mxu0 0.0
        %1447 = vmatpush.msra.mxu0 0.0
        %1448 = vmatpush.msra.mxu0 0.0
        %1449 = vmatpush.msra.mxu0 0.0
        %1450 = vmatpush.msra.mxu0 0.0
        %v1451 = vand.u32 %v1051, 4294901760
        %v1452 = vsub.f32 %v1051, %v1451
        %v1453 = vand.u32 %v1452, 4294901760
        %1454 = vmatpush.msra.mxu0 %v1453
        %v1455 = vand.u32 %v1049, 4294901760
        %v1456 = vsub.f32 %v1049, %v1455
        %v1457 = vand.u32 %v1456, 4294901760
        %1458 = vmatpush.msra.mxu0 %v1457
        %v1459 = vand.u32 %v1047, 4294901760
        %v1460 = vsub.f32 %v1047, %v1459
        %v1461 = vand.u32 %v1460, 4294901760
        %1462 = vmatpush.msra.mxu0 %v1461
        %v1463 = vand.u32 %v1045, 4294901760
        %v1464 = vsub.f32 %v1045, %v1463
        %v1465 = vand.u32 %v1464, 4294901760
        %1466 = vmatpush.msra.mxu0 %v1465
        %v1467 = vand.u32 %v1068, 4294901760
        %1468 = vmatmul.f32.gmra.mxu0 %v1467
        %v1469 = vpop.f32.mrf.mxu0
        %v1470 = vadd.f32 %v1431, %v1469
        %v1471 = vand.u32 %v1071, 4294901760
        %1472 = vmatmul.f32.gmra.mxu0 %v1471
        %v1473 = vpop.f32.mrf.mxu0
        %v1474 = vadd.f32 %v1437, %v1473
        %1475 = vdwg.mxu0
        %1476 = vmatpush.msra.mxu0 0.0
        %1477 = vmatpush.msra.mxu0 0.0
        %1478 = vmatpush.msra.mxu0 0.0
        %1479 = vmatpush.msra.mxu0 0.0
        %1480 = vmatpush.msra.mxu0 0.0
        %1481 = vmatpush.msra.mxu0 0.0
        %1482 = vmatpush.msra.mxu0 0.0
        %1483 = vmatpush.msra.mxu0 0.0
        %1484 = vmatpush.msra.mxu0 0.0
        %1485 = vmatpush.msra.mxu0 0.0
        %1486 = vmatpush.msra.mxu0 0.0
        %1487 = vmatpush.msra.mxu0 0.0
        %v1488 = vand.u32 %v1051, 4294901760
        %1489 = vmatpush.msra.mxu0 %v1488
        %v1490 = vand.u32 %v1049, 4294901760
        %1491 = vmatpush.msra.mxu0 %v1490
        %v1492 = vand.u32 %v1047, 4294901760
        %1493 = vmatpush.msra.mxu0 %v1492
        %v1494 = vand.u32 %v1045, 4294901760
        %1495 = vmatpush.msra.mxu0 %v1494
        %v1496 = vand.u32 %v1068, 4294901760
        %1497 = vmatmul.f32.gmra.mxu0 %v1496
        %v1498 = vpop.f32.mrf.mxu0
        %v1499 = vadd.f32 %v1470, %v1498
        %v1500 = vand.u32 %v1071, 4294901760
        %1501 = vmatmul.f32.gmra.mxu0 %v1500
        %v1502 = vpop.f32.mrf.mxu0
        %v1503 = vadd.f32 %v1474, %v1502
        %1504 = vdwg.mxu0
        %v1505 = vmax.f32 %v1283, 0.0
        %v1506 = vmax.f32 %v1499, 0.0
        %v1507 = vmax.f32 %v1287, 0.0
        %v1508 = vmax.f32 %v1503, 0.0
        %v1509 = vld [vmem:[%s6] sm:$0xff]
        %v1510 = vld [vmem:[%s6 + $0x8] sm:$0xff]
        %1512 = vset.pattern.permute.xlu0 0
        %1513 = vperm.xlu0 %1512, %v1509
        %v1514 = vpop.permute.xlu0 %1513
        %1517 = vset.pattern.permute.xlu0 0
        %1518 = vperm.xlu0 %1517, %v1510
        %v1519 = vpop.permute.xlu0 %1518
        %v1521 = vmul.f32 %v1505, %v1514
        %v1522 = vmul.f32 %v1506, %v1514
        %v1523 = vmul.f32 %v1507, %v1519
        %v1524 = vmul.f32 %v1508, %v1519
        %v1525 = vadd.f32 %v1521, %v1523
        %v1526 = vrot.slane %v1525, 4
        %v1527 = vadd.f32 %v1525, %v1526
        %v1528 = vrot.slane %v1527, 2
        %v1529 = vadd.f32 %v1527, %v1528
        %v1530 = vrot.slane %v1529, 1
        %v1531 = vadd.f32 %v1529, %v1530
        %v1532 = vadd.f32 %v1522, %v1524
        %v1533 = vrot.slane %v1532, 4
        %v1534 = vadd.f32 %v1532, %v1533
        %v1535 = vrot.slane %v1534, 2
        %v1536 = vadd.f32 %v1534, %v1535
        %v1537 = vrot.slane %v1536, 1
        %v1538 = vadd.f32 %v1536, %v1537
        %v1539 = vld [vmem:[#allocation2] sm:$0x1]
        %1541 = vset.pattern.permute.xlu0 0
        %1542 = vperm.xlu0 %1541, %v1539
        %v1543 = vpop.permute.xlu0 %1542
        %v1545 = vperm.slane %v1543, 0
        %v1546 = vadd.f32 %v1531, %v1545
        %v1547 = vadd.f32 %v1538, %v1545
        %v1548 = vmax.f32 %v1546, 0.0
        %v1549 = vmax.f32 %v1547, 0.0
        %v1550 = vand.u32 2147483647, %v1546
        %v1551 = vand.u32 2147483647, %v1547
        %v1552 = vsub.f32 0.0, %v1550
        %v1553 = vsub.f32 0.0, %v1551
        %v1554 = vmul.f32 %v1552, 1.442695
        %v1555 = vpow.pop %v1554
        %v1556 = vmul.f32 %v1553, 1.442695
        %v1557 = vpow.pop %v1556
        %v1558 = vadd.f32 %v1555, 1.0
        %v1559 = vlog2.pop %v1558
        %v1560 = vmul.f32 %v1559, 0.6931472
        %v1561 = vmul.f32 -0.5, %v1555
        %v1562 = vadd.f32 %v1561, 1.0
        %v1563 = vmul.f32 %v1562, %v1555
        %v1564 = vand.u32 2147483647, %v1555
        %vm1565 = vcmp.lt.f32.partialorder %v1564, 0.0004427343
        %v1566 = vsel %vm1565, %v1563, %v1560
        %v1567 = vadd.f32 %v1557, 1.0
        %v1568 = vlog2.pop %v1567
        %v1569 = vmul.f32 %v1568, 0.6931472
        %v1570 = vmul.f32 -0.5, %v1557
        %v1571 = vadd.f32 %v1570, 1.0
        %v1572 = vmul.f32 %v1571, %v1557
        %v1573 = vand.u32 2147483647, %v1557
        %vm1574 = vcmp.lt.f32.partialorder %v1573, 0.0004427343
        %v1575 = vsel %vm1574, %v1572, %v1569
        %v1576 = vadd.f32 %v1548, %v1566
        %v1577 = vadd.f32 %v1549, %v1575
        %v1580 = vrot.slane %v1577, 7
        %vm1581 = vcmask 1040384
        %v1582 = vsel %vm1581, %v1576, %v1580
        %v1584 = vlaneseq
        %vm1585 = vcmp.ge.s32.totalorder %v1584, 0
        %vm1586 = vcmp.lt.s32.totalorder %v1584, 256
        %vm1587 = vmand %vm1585, %vm1586
        %1588 = vst.msk [vmem:[%s358] sm:$0x3] %vm1587, %v1582
        %s1589 = sand.u32 %s214, 1
        %s1590 = scalar_lea.sflag [#allocation5], %s1589
        %s1591 = sand.u32 %s214, 1
        %s1592 = smul.addr %s1591, 2
        %s1593 = scalar_lea.vmem [#allocation8], %s1592
        // Predicated region
        $region61: #{tpu_custom_call.1} parent=51 // pred_check
          %p1594 = pneg %p224
        $region62: #{tpu_custom_call.1} parent=51 // pred_check_branch
          %1596 = sbr.rel (%p1594) target = $region64
        $region63: #{tpu_custom_call.1} parent=51 // pred_region
          %s1597 = smul.u32 2, %s28
          %1599 = vsyncadd %s1590, 0
          %s1600 = scalar_lea.hbm %s8, %s1597
          %s1602 = sshll.u32 %s1593, 4
          %s1603 = int_to_ptr.vmem [resolvable:$true] %s1602
          %s1604 = sshll.u32 %s1600, 4
          %s1605 = int_to_ptr.hbm [resolvable:$true] %s1604
          %1607 = dma.vmem_to_hbm [thread:$0]  %s1603, 32, %s1605, %s1590
        $region64: #{tpu_custom_call.1} parent=51 // pred_fallthru
          _
      $region52: #{tpu_custom_call.1} parent=5 // pred_fallthru
        _
      %p1608 = scmp.le.s32.totalorder 2, %s23
      // Predicated region
      $region65: #{tpu_custom_call.1} parent=5 // pred_check
        %p1609 = pneg %p1608
      $region66: #{tpu_custom_call.1} parent=5 // pred_check_branch
        %1611 = sbr.rel (%p1609) target = $region68
      $region67: #{tpu_custom_call.1} parent=5 // pred_region
        %s1612 = ssub.s32 %s23, 2
        // Predicated region
        $region69: #{tpu_custom_call.1} parent=67 // pred_check
          %p1613 = pneg %p230
        $region70: #{tpu_custom_call.1} parent=67 // pred_check_branch
          %1615 = sbr.rel (%p1613) target = $region72
        $region71: #{tpu_custom_call.1} parent=67 // pred_region
          %s1616 = sand.u32 %s215, 1
          %s1617 = scalar_lea.sflag [#allocation5], %s1616
          %s1618 = sand.u32 %s215, 1
          %s1619 = smul.addr %s1618, 2
          %s1620 = scalar_lea.vmem [#allocation8], %s1619
          %1622 = dma.done %s1617, 32
        $region72: #{tpu_custom_call.1} parent=67 // pred_fallthru
          _
      $region68: #{tpu_custom_call.1} parent=5 // pred_fallthru
        _
    $region6: #{tpu_custom_call.1} parent=1 // loop_footer
      %s27 = sadd.s32 1, %s23
    $region7: #{tpu_custom_call.1} parent=1 // loop_footer_branch
      %22 = sbr.rel target = $region3
    $region8: #{tpu_custom_call.1} parent=1 // loop_exit
      _
    %1623 = vsyncpa [#allocation4], 1
    %s1624 = scalar_lea.sflag [#allocation4], 1
    %1625 = vsyncpa %s1624, 1
    %1626 = vsyncpa [#allocation7], 1
    %1627 = vsyncpa [#allocation5], 1
    %s1628 = scalar_lea.sflag [#allocation5], 1
    %1629 = vsyncpa %s1628, 1

</llo_original>
